<compile_context>
chip_gen: v5e
topology: v5e:2x2
jax: 0.10.0
libtpu: 0.0.40
codegen_flags: <defaults>
</compile_context>

<pallas_src>
import functools

import jax
import jax.numpy as jnp
import numpy as np
from jax import lax
from jax.experimental import pallas as pl
from jax.experimental.pallas import tpu as pltpu

C_IN = 3
C_FEAT = 8
NUM_CLASSES = 5
C_CLS_PAD = 8          # classes padded 5 -> 8 so the output tile is a clean (8, H*W) slab


# -----------------------------------------------------------------------------
# Fused kernel: backbone(3x3 conv + ReLU) on both streams + concat + 1x1 head
# -----------------------------------------------------------------------------
def _fused_segmentor_kernel(x_ref, wbb_ref, bbb_ref, whd_ref, bhd_ref, o_ref, *, H, W):
    """One image (+ its pre_image) per grid step.

    x_ref   : (1, H+2, W+2, 6)  mean-padded NHWC block, channels = [img RGB, pre RGB]
    wbb_ref : (16, 54)          block-diagonal, normalization-folded conv weight (transposed)
    bbb_ref : (16, 1)           folded conv bias (column)
    whd_ref : (8, 16)           head weight, transposed + class-padded
    bhd_ref : (8, 1)            head bias (column, class-padded)
    o_ref   : (1, 8, H*W)       class-major logits (lane-dense store)
    """
    x = x_ref[0]                                              # (H+2, W+2, 6)

    # In-register im2col: 9 shifted views, channel-minor -> (H*W, 54).  Never hits HBM.
    cols = [x[dh:dh + H, dw:dw + W, :] for dh in range(3) for dw in range(3)]
    patches = jnp.concatenate(cols, axis=-1).reshape(H * W, 54)

    # Backbone for both streams at once (block-diagonal weight == channel concat).
    # feat[o, p] = sum_k wbb[o, k] * patches[p, k]  -> (16, H*W), pixels on lanes.
    feat = lax.dot_general(wbb_ref[...], patches,
                           dimension_numbers=(((1,), (1,)), ((), ())),
                           preferred_element_type=jnp.float32)
    feat = jnp.maximum(feat + bbb_ref[...], 0.0)

    # 1x1 conv head on the concatenated features.
    logits = jnp.dot(whd_ref[...], feat,
                     preferred_element_type=jnp.float32) + bhd_ref[...]
    o_ref[0] = logits.astype(o_ref.dtype)                     # (8, H*W), full-lane stores


# -----------------------------------------------------------------------------
# Parameter folding: normalization -> conv; two streams -> block-diagonal weight
# -----------------------------------------------------------------------------
def _fold_params(params):
    mean, std = params["pixel_mean"], params["pixel_std"]
    inv_std = 1.0 / std
    w_bb = params["w_backbone"]                               # (3, 3, 3, 8)  [kh, kw, cin, f]
    w_fold = w_bb * inv_std[None, None, :, None]
    b_fold = params["b_backbone"] - jnp.einsum("hwcf,c->f", w_bb, mean * inv_std)

    wf = w_fold.reshape(9, C_IN, C_FEAT)                      # tap-major == patch layout
    w_comb = jnp.zeros((9, 2 * C_IN, 2 * C_FEAT), jnp.float32)
    w_comb = w_comb.at[:, :C_IN, :C_FEAT].set(wf)             # image stream -> feat[:8]
    w_comb = w_comb.at[:, C_IN:, C_FEAT:].set(wf)             # pre stream   -> feat[8:]
    w_comb_t = w_comb.reshape(9 * 2 * C_IN, 2 * C_FEAT).T     # (16, 54)
    b_comb = jnp.concatenate([b_fold, b_fold]).reshape(2 * C_FEAT, 1)

    w_head_t = jnp.zeros((C_CLS_PAD, 2 * C_FEAT), jnp.float32)
    w_head_t = w_head_t.at[:NUM_CLASSES, :].set(params["w_head"].T)
    b_head = jnp.zeros((C_CLS_PAD, 1), jnp.float32)
    b_head = b_head.at[:NUM_CLASSES, 0].set(params["b_head"])
    return w_comb_t, b_comb, w_head_t, b_head


# -----------------------------------------------------------------------------
# Forward pass
# -----------------------------------------------------------------------------
@jax.jit
def semantic_segmentor_forward(images, pre_images, params):
    """images / pre_images: (N, 3, H, W) float32 NCHW.  Returns (N, 5, H, W) logits."""
    N, _, H, W = images.shape
    Hp, Wp = H + 2, W + 2
    P = H * W

    # Single XLA pass over the inputs: NCHW -> NHWC, pack the two streams on the
    # channel axis and fill the 1-pixel conv halo with the per-channel pixel mean
    # (which keeps the folded normalization exact at the borders).
    x = jnp.concatenate([jnp.transpose(images, (0, 2, 3, 1)),
                         jnp.transpose(pre_images, (0, 2, 3, 1))], axis=-1)
    mean6 = jnp.concatenate([params["pixel_mean"], params["pixel_mean"]])
    x_pad = jnp.broadcast_to(mean6, (N, Hp, Wp, 2 * C_IN)).at[:, 1:-1, 1:-1, :].set(x)

    w_comb_t, b_comb, w_head_t, b_head = _fold_params(params)

    # TODO(synk): for very large images, tile H with a 1-row halo (manual
    # make_async_copy double-buffer) so each block stays within v7x's 64 MiB VMEM.
    out = pl.pallas_call(
        functools.partial(_fused_segmentor_kernel, H=H, W=W),
        out_shape=jax.ShapeDtypeStruct((N, C_CLS_PAD, P), jnp.float32),
        grid=(N,),
        in_specs=[
            pl.BlockSpec((1, Hp, Wp, 2 * C_IN), lambda n: (n, 0, 0, 0)),
            pl.BlockSpec((2 * C_FEAT, 9 * 2 * C_IN), lambda n: (0, 0)),
            pl.BlockSpec((2 * C_FEAT, 1), lambda n: (0, 0)),
            pl.BlockSpec((C_CLS_PAD, 2 * C_FEAT), lambda n: (0, 0)),
            pl.BlockSpec((C_CLS_PAD, 1), lambda n: (0, 0)),
        ],
        out_specs=pl.BlockSpec((1, C_CLS_PAD, P), lambda n: (n, 0, 0)),
        compiler_params=pltpu.CompilerParams(
            dimension_semantics=("parallel",)),   # batch shards across v7x's 2 TCs
    )(x_pad, w_comb_t, b_comb, w_head_t, b_head)

    # Output is already channel-major: the reshape is free; drop padded classes.
    logits = out.reshape(N, C_CLS_PAD, H, W)[:, :NUM_CLASSES]

    # sem_seg_postprocess: common_stride == 1 and output size == input size -> identity.
    # TODO(synk): training-mode cross-entropy losses (ignore_value) not implemented.
    return logits


# -----------------------------------------------------------------------------
# Synthetic parameters + pure-JAX reference (original, un-folded op ordering)
# -----------------------------------------------------------------------------
def init_params(key):
    k1, k2, k3, k4 = jax.random.split(key, 4)
    w_bb = jax.random.normal(k1, (3, 3, C_IN, C_FEAT), jnp.float32) * (2.0 / (9 * C_IN)) ** 0.5
    b_bb = jax.random.normal(k2, (C_FEAT,), jnp.float32) * 0.01
    w_hd = jax.random.normal(k3, (2 * C_FEAT, NUM_CLASSES), jnp.float32) * (2.0 / (2 * C_FEAT)) ** 0.5
    b_hd = jax.random.normal(k4, (NUM_CLASSES,), jnp.float32) * 0.01
    return {
        "w_backbone": w_bb, "b_backbone": b_bb,
        "w_head": w_hd, "b_head": b_hd,
        "pixel_mean": jnp.array([103.53, 116.28, 123.675], jnp.float32),
        "pixel_std": jnp.array([57.375, 57.12, 58.395], jnp.float32),
    }


def reference_forward(images, pre_images, params):
    def normalize(x):
        return (x - params["pixel_mean"][None, :, None, None]) / params["pixel_std"][None, :, None, None]

    def backbone(x):
        y = lax.conv_general_dilated(x, params["w_backbone"], (1, 1), "SAME",
                                     dimension_numbers=("NCHW", "HWIO", "NCHW"))
        return jnp.maximum(y + params["b_backbone"][None, :, None, None], 0.0)

    feats = jnp.concatenate([backbone(normalize(images)),
                             backbone(normalize(pre_images))], axis=1)
    return (jnp.einsum("nchw,cf->nfhw", feats, params["w_head"])
            + params["b_head"][None, :, None, None])


if __name__ == "__main__":
    params = init_params(jax.random.PRNGKey(0))

    N, H, W = 2, 16, 16
    k_img, k_pre = jax.random.split(jax.random.PRNGKey(0), 2)
    images = jax.random.uniform(k_img, (N, C_IN, H, W), jnp.float32) * 255.0
    pre_images = jax.random.uniform(k_pre, (N, C_IN, H, W), jnp.float32) * 255.0

    out = semantic_segmentor_forward(images, pre_images, params)
    jax.block_until_ready(out)
    assert out.shape == (N, NUM_CLASSES, H, W)

    # Numerical check against the un-fused, un-folded reference (loose tolerance to
    # allow for MXU f32-via-bf16-pass rounding differences).
    ref = reference_forward(images, pre_images, params)
    np.testing.assert_allclose(np.asarray(out), np.asarray(ref), rtol=0.05, atol=0.5)

    # Mirror the module's return structure: list of {"sem_seg": (C, H, W)} dicts.
    processed_results = [{"sem_seg": out[i]} for i in range(N)]
    assert processed_results[0]["sem_seg"].shape == (NUM_CLASSES, H, W)
    print("KERNEL_OK")
</pallas_src>

<mosaic_0001>
module attributes {stable_mosaic.version = 11 : i64} {
  func.func @_fused_segmentor_kernel(%arg0: i32, %arg1: memref<1x18x18x6xf32, #tpu.memory_space<vmem>>, %arg2: memref<16x54xf32, #tpu.memory_space<vmem>>, %arg3: memref<16x1xf32, #tpu.memory_space<vmem>>, %arg4: memref<8x16xf32, #tpu.memory_space<vmem>>, %arg5: memref<8x1xf32, #tpu.memory_space<vmem>>, %arg6: memref<1x8x256xf32, #tpu.memory_space<vmem>>) attributes {dimension_semantics = [#tpu.dimension_semantics<parallel>], iteration_bounds = array<i64: 2>, scalar_prefetch = 0 : i64, scratch_operands = 0 : i64, tpu.core_type = #tpu.core_type<tc>, window_params = [{transform_indices = @transform_0, window_bounds = array<i64: 1, 18, 18, 6>}, {pipeline_mode = #tpu.pipeline_mode<synchronous>, transform_indices = @transform_1, window_bounds = array<i64: 16, 54>}, {pipeline_mode = #tpu.pipeline_mode<synchronous>, transform_indices = @transform_2, window_bounds = array<i64: 16, 1>}, {pipeline_mode = #tpu.pipeline_mode<synchronous>, transform_indices = @transform_3, window_bounds = array<i64: 8, 16>}, {pipeline_mode = #tpu.pipeline_mode<synchronous>, transform_indices = @transform_4, window_bounds = array<i64: 8, 1>}, {transform_indices = @transform_5, window_bounds = array<i64: 1, 8, 256>}]} {
    %c0 = arith.constant 0 : index
    %c0_0 = arith.constant 0 : index
    %c0_1 = arith.constant 0 : index
    %c0_2 = arith.constant 0 : index
    %0 = vector.load %arg1[%c0, %c0_0, %c0_1, %c0_2] : memref<1x18x18x6xf32, #tpu.memory_space<vmem>>, vector<1x18x18x6xf32>
    %1 = vector.shape_cast %0 : vector<1x18x18x6xf32> to vector<18x18x6xf32>
    %2 = vector.extract_strided_slice %1 {offsets = [0, 0, 0], sizes = [16, 16, 6], strides = [1, 1, 1]} : vector<18x18x6xf32> to vector<16x16x6xf32>
    %3 = vector.extract_strided_slice %1 {offsets = [0, 1, 0], sizes = [16, 16, 6], strides = [1, 1, 1]} : vector<18x18x6xf32> to vector<16x16x6xf32>
    %4 = vector.extract_strided_slice %1 {offsets = [0, 2, 0], sizes = [16, 16, 6], strides = [1, 1, 1]} : vector<18x18x6xf32> to vector<16x16x6xf32>
    %5 = vector.extract_strided_slice %1 {offsets = [1, 0, 0], sizes = [16, 16, 6], strides = [1, 1, 1]} : vector<18x18x6xf32> to vector<16x16x6xf32>
    %6 = vector.extract_strided_slice %1 {offsets = [1, 1, 0], sizes = [16, 16, 6], strides = [1, 1, 1]} : vector<18x18x6xf32> to vector<16x16x6xf32>
    %7 = vector.extract_strided_slice %1 {offsets = [1, 2, 0], sizes = [16, 16, 6], strides = [1, 1, 1]} : vector<18x18x6xf32> to vector<16x16x6xf32>
    %8 = vector.extract_strided_slice %1 {offsets = [2, 0, 0], sizes = [16, 16, 6], strides = [1, 1, 1]} : vector<18x18x6xf32> to vector<16x16x6xf32>
    %9 = vector.extract_strided_slice %1 {offsets = [2, 1, 0], sizes = [16, 16, 6], strides = [1, 1, 1]} : vector<18x18x6xf32> to vector<16x16x6xf32>
    %10 = vector.extract_strided_slice %1 {offsets = [2, 2, 0], sizes = [16, 16, 6], strides = [1, 1, 1]} : vector<18x18x6xf32> to vector<16x16x6xf32>
    %11 = tpu.concatenate %2, %3, %4, %5, %6, %7, %8, %9, %10 in 2 : vector<16x16x6xf32>, vector<16x16x6xf32>, vector<16x16x6xf32>, vector<16x16x6xf32>, vector<16x16x6xf32>, vector<16x16x6xf32>, vector<16x16x6xf32>, vector<16x16x6xf32>, vector<16x16x6xf32> -> vector<16x16x54xf32>
    %12 = vector.shape_cast %11 : vector<16x16x54xf32> to vector<256x54xf32>
    %c0_3 = arith.constant 0 : index
    %c0_4 = arith.constant 0 : index
    %13 = vector.load %arg2[%c0_3, %c0_4] : memref<16x54xf32, #tpu.memory_space<vmem>>, vector<16x54xf32>
    %cst = arith.constant dense<0.000000e+00> : vector<16x256xf32>
    %14 = tpu.matmul %13, %12, %cst {dimension_numbers = #tpu.dot_dimension_numbers<[1], [1], [0], [0], [0, 0, 1, 0], [], []>} : vector<16x54xf32>, vector<256x54xf32>, vector<16x256xf32> -> vector<16x256xf32>
    %c0_5 = arith.constant 0 : index
    %c0_6 = arith.constant 0 : index
    %15 = vector.load %arg3[%c0_5, %c0_6] : memref<16x1xf32, #tpu.memory_space<vmem>>, vector<16x1xf32>
    %16 = vector.broadcast %15 : vector<16x1xf32> to vector<16x256xf32>
    %17 = arith.addf %14, %16 : vector<16x256xf32>
    %cst_7 = arith.constant 0.000000e+00 : f32
    %18 = vector.broadcast %cst_7 : f32 to vector<16x256xf32>
    %19 = arith.maximumf %17, %18 : vector<16x256xf32>
    %c0_8 = arith.constant 0 : index
    %c0_9 = arith.constant 0 : index
    %20 = vector.load %arg4[%c0_8, %c0_9] : memref<8x16xf32, #tpu.memory_space<vmem>>, vector<8x16xf32>
    %cst_10 = arith.constant dense<0.000000e+00> : vector<8x256xf32>
    %21 = tpu.matmul %20, %19, %cst_10 {dimension_numbers = #tpu.dot_dimension_numbers<[1], [0], [0], [1], [0, 0, 1, 1], [], []>} : vector<8x16xf32>, vector<16x256xf32>, vector<8x256xf32> -> vector<8x256xf32>
    %c0_11 = arith.constant 0 : index
    %c0_12 = arith.constant 0 : index
    %22 = vector.load %arg5[%c0_11, %c0_12] : memref<8x1xf32, #tpu.memory_space<vmem>>, vector<8x1xf32>
    %23 = vector.broadcast %22 : vector<8x1xf32> to vector<8x256xf32>
    %24 = arith.addf %21, %23 : vector<8x256xf32>
    %c0_13 = arith.constant 0 : index
    %c0_14 = arith.constant 0 : index
    %c0_15 = arith.constant 0 : index
    %25 = vector.load %arg6[%c0_13, %c0_14, %c0_15] : memref<1x8x256xf32, #tpu.memory_space<vmem>>, vector<1x8x256xf32>
    %26 = vector.shape_cast %25 : vector<1x8x256xf32> to vector<8x256xf32>
    %27 = vector.shape_cast %24 : vector<8x256xf32> to vector<1x8x256xf32>
    tpu.vector_store %arg6[%c0_13, %c0_14, %c0_15], %27 {strides = array<i32>} : memref<1x8x256xf32, #tpu.memory_space<vmem>>, vector<1x8x256xf32>,
    return
  }
  func.func @transform_0(%arg0: i32) -> (i32, i32, i32, i32) {
    %c0_i32 = arith.constant 0 : i32
    %c0_i32_0 = arith.constant 0 : i32
    %c0_i32_1 = arith.constant 0 : i32
    %c0_i32_2 = arith.constant 0 : i32
    return %arg0, %c0_i32, %c0_i32_0, %c0_i32_1 : i32, i32, i32, i32
  }
  func.func @transform_1(%arg0: i32) -> (i32, i32) {
    %c0_i32 = arith.constant 0 : i32
    %c0_i32_0 = arith.constant 0 : i32
    %c0_i32_1 = arith.constant 0 : i32
    return %c0_i32, %c0_i32_0 : i32, i32
  }
  func.func @transform_2(%arg0: i32) -> (i32, i32) {
    %c0_i32 = arith.constant 0 : i32
    %c0_i32_0 = arith.constant 0 : i32
    %c0_i32_1 = arith.constant 0 : i32
    return %c0_i32, %c0_i32_0 : i32, i32
  }
  func.func @transform_3(%arg0: i32) -> (i32, i32) {
    %c0_i32 = arith.constant 0 : i32
    %c0_i32_0 = arith.constant 0 : i32
    %c0_i32_1 = arith.constant 0 : i32
    return %c0_i32, %c0_i32_0 : i32, i32
  }
  func.func @transform_4(%arg0: i32) -> (i32, i32) {
    %c0_i32 = arith.constant 0 : i32
    %c0_i32_0 = arith.constant 0 : i32
    %c0_i32_1 = arith.constant 0 : i32
    return %c0_i32, %c0_i32_0 : i32, i32
  }
  func.func @transform_5(%arg0: i32) -> (i32, i32, i32) {
    %c0_i32 = arith.constant 0 : i32
    %c0_i32_0 = arith.constant 0 : i32
    %c0_i32_1 = arith.constant 0 : i32
    return %arg0, %c0_i32, %c0_i32_0 : i32, i32, i32
  }
}

</mosaic_0001>

<llo_original>
// kernel: sub.1
$region0: #{sub.1}
  #allocation0 [shape = 's32[1]{0}', space=sflag, size = 0x4, scoped, tag = 'scoped memory for sub.1']
  %s0 = inlined_call_operand.vmem [shape: f32[8], index: 0, kind: input, shape index: {}]
  %s1 = inlined_call_operand.vmem [shape: f32[8], index: 1, kind: input, shape index: {}]
  %s2 = inlined_call_operand.vmem [shape: f32[8], index: 2, kind: output, shape index: {}]
  %v3 = vld [vmem:[%s0] sm:$0x1]
  %v4 = vld [vmem:[%s1] sm:$0x1]
  %5 = xla_tuple %v3, %v4
  %6 = xla_tuple %5
  %v7 = vsub.f32 %v3, %v4
  %8 = xla_tuple %v7
  %9 = vst [vmem:[%s2] sm:$0x1] %v7

// kernel: semantic_segmentor_forward.1
$region0: #{semantic_segmentor_forward.1}
  #allocation0 [shape = 'u32[]', space=smem, size = 0x4, offset = 0x4, fixed_abs, tag = 'smem constant byte address 0x4 - core index']
  #allocation1 [shape = 'u32[72,128]{1,0:T(1,128)}', space=vmem, size = 0x9000, scoped, tag = 'internal scratch']
  %s0 = inlined_call_operand.vmem [shape: f32[2,18,18,6], index: 0, kind: input, shape index: {}]
  %s1 = inlined_call_operand.vmem [shape: f32[16,54], index: 1, kind: input, shape index: {}]
  %s2 = inlined_call_operand.vmem [shape: f32[16,1], index: 2, kind: input, shape index: {}]
  %s3 = inlined_call_operand.vmem [shape: f32[8,16], index: 3, kind: input, shape index: {}]
  %s4 = inlined_call_operand.vmem [shape: f32[8,1], index: 4, kind: input, shape index: {}]
  %s5 = inlined_call_operand.vmem [shape: f32[2,8,256], index: 5, kind: output, shape index: {}]
  %s6 = sld [smem:[#allocation0]]
  $region53: #{semantic_segmentor_forward.1} parent=0
    _
  %s8 = ssub.s32 1, %s6
  %s9 = scalar_select 0, %s8, %s6
  loop: start=0, step=1, limit=4
  $region2: #{semantic_segmentor_forward.1} parent=0 // loop_pre_header
    _
  $region3: #{semantic_segmentor_forward.1} parent=0 // loop_header
    %s11 = sphi 0, %s15
    %p12 = scmp.ge.s32.totalorder %s11, 4
    %s21 = sphi 0, %s23
    %s24 = sphi 0, %s21
    %s25 = sphi 0, %s24
    %s41 = sphi 0, %s25
    %s45 = sphi 0, %s45
    %s47 = sphi 0, %s45
    %s48 = sphi 0, %s47
    %s62 = sphi 0, %s48
    %s66 = sphi 0, %s66
    %s68 = sphi 0, %s66
    %s69 = sphi 0, %s68
    %s83 = sphi 0, %s69
    %s87 = sphi 0, %s87
    %s89 = sphi 0, %s87
    %s90 = sphi 0, %s89
    %s104 = sphi 0, %s90
    %s108 = sphi 0, %s108
    %s110 = sphi 0, %s108
    %s111 = sphi 0, %s110
    %s125 = sphi 0, %s111
    %s131 = sphi 0, %s133
    %s134 = sphi 0, %s131
    %s135 = sphi 0, %s134
    %s151 = sphi 0, %s135
  $region4: #{semantic_segmentor_forward.1} parent=0 // loop_header_branch
    %14 = sbr.rel (%p12) target = $region8
  $region5: #{semantic_segmentor_forward.1} parent=0 // loop_body
    %s16 = ssub.s32 %s11, 1
    %s17 = ssub.s32 %s11, 2
    %s18 = sadd.s32 %s11, 1
    %s19 = ssub.s32 %s11, %s18
    %p20 = scmp.eq.s32.totalorder %s19, 0
    %s22 = sadd.s32 %s21, 1
    %s23 = scalar_select %p20, %s21, %s22
    %p26 = pneg %p20
    %p27 = scmp.eq.s32.totalorder %s11, 1
    %p28 = por %p26, %p27
    %p29 = scmp.ne.s32.totalorder %s21, %s24
    %p30 = scmp.eq.s32.totalorder %s11, 0
    %p31 = por %p29, %p30
    %p32 = scmp.ne.s32.totalorder %s21, %s24
    %p33 = scmp.eq.s32.totalorder %s16, 1
    %p34 = por %p32, %p33
    %p35 = scmp.ne.s32.totalorder %s24, %s25
    %p36 = scmp.eq.s32.totalorder %s16, 0
    %p37 = por %p35, %p36
    %p38 = scmp.ne.s32.totalorder %s24, %s25
    %p39 = scmp.eq.s32.totalorder %s17, 1
    %p40 = por %p38, %p39
    %p42 = scmp.ne.s32.totalorder %s25, %s41
    %p43 = scmp.eq.s32.totalorder %s17, 0
    %p44 = por %p42, %p43
    %s46 = sadd.s32 %s45, 1
    %p49 = scmp.eq.s32.totalorder %s11, 1
    %p50 = scmp.ne.s32.totalorder %s45, %s47
    %p51 = scmp.eq.s32.totalorder %s11, 0
    %p52 = por %p50, %p51
    %p53 = scmp.ne.s32.totalorder %s45, %s47
    %p54 = scmp.eq.s32.totalorder %s16, 1
    %p55 = por %p53, %p54
    %p56 = scmp.ne.s32.totalorder %s47, %s48
    %p57 = scmp.eq.s32.totalorder %s16, 0
    %p58 = por %p56, %p57
    %p59 = scmp.ne.s32.totalorder %s47, %s48
    %p60 = scmp.eq.s32.totalorder %s17, 1
    %p61 = por %p59, %p60
    %p63 = scmp.ne.s32.totalorder %s48, %s62
    %p64 = scmp.eq.s32.totalorder %s17, 0
    %p65 = por %p63, %p64
    %s67 = sadd.s32 %s66, 1
    %p70 = scmp.eq.s32.totalorder %s11, 1
    %p71 = scmp.ne.s32.totalorder %s66, %s68
    %p72 = scmp.eq.s32.totalorder %s11, 0
    %p73 = por %p71, %p72
    %p74 = scmp.ne.s32.totalorder %s66, %s68
    %p75 = scmp.eq.s32.totalorder %s16, 1
    %p76 = por %p74, %p75
    %p77 = scmp.ne.s32.totalorder %s68, %s69
    %p78 = scmp.eq.s32.totalorder %s16, 0
    %p79 = por %p77, %p78
    %p80 = scmp.ne.s32.totalorder %s68, %s69
    %p81 = scmp.eq.s32.totalorder %s17, 1
    %p82 = por %p80, %p81
    %p84 = scmp.ne.s32.totalorder %s69, %s83
    %p85 = scmp.eq.s32.totalorder %s17, 0
    %p86 = por %p84, %p85
    %s88 = sadd.s32 %s87, 1
    %p91 = scmp.eq.s32.totalorder %s11, 1
    %p92 = scmp.ne.s32.totalorder %s87, %s89
    %p93 = scmp.eq.s32.totalorder %s11, 0
    %p94 = por %p92, %p93
    %p95 = scmp.ne.s32.totalorder %s87, %s89
    %p96 = scmp.eq.s32.totalorder %s16, 1
    %p97 = por %p95, %p96
    %p98 = scmp.ne.s32.totalorder %s89, %s90
    %p99 = scmp.eq.s32.totalorder %s16, 0
    %p100 = por %p98, %p99
    %p101 = scmp.ne.s32.totalorder %s89, %s90
    %p102 = scmp.eq.s32.totalorder %s17, 1
    %p103 = por %p101, %p102
    %p105 = scmp.ne.s32.totalorder %s90, %s104
    %p106 = scmp.eq.s32.totalorder %s17, 0
    %p107 = por %p105, %p106
    %s109 = sadd.s32 %s108, 1
    %p112 = scmp.eq.s32.totalorder %s11, 1
    %p113 = scmp.ne.s32.totalorder %s108, %s110
    %p114 = scmp.eq.s32.totalorder %s11, 0
    %p115 = por %p113, %p114
    %p116 = scmp.ne.s32.totalorder %s108, %s110
    %p117 = scmp.eq.s32.totalorder %s16, 1
    %p118 = por %p116, %p117
    %p119 = scmp.ne.s32.totalorder %s110, %s111
    %p120 = scmp.eq.s32.totalorder %s16, 0
    %p121 = por %p119, %p120
    %p122 = scmp.ne.s32.totalorder %s110, %s111
    %p123 = scmp.eq.s32.totalorder %s17, 1
    %p124 = por %p122, %p123
    %p126 = scmp.ne.s32.totalorder %s111, %s125
    %p127 = scmp.eq.s32.totalorder %s17, 0
    %p128 = por %p126, %p127
    %s129 = ssub.s32 %s11, %s18
    %p130 = scmp.eq.s32.totalorder %s129, 0
    %s132 = sadd.s32 %s131, 1
    %s133 = scalar_select %p130, %s131, %s132
    %p136 = pneg %p130
    %p137 = scmp.eq.s32.totalorder %s11, 1
    %p138 = por %p136, %p137
    %p139 = scmp.ne.s32.totalorder %s131, %s134
    %p140 = scmp.eq.s32.totalorder %s11, 0
    %p141 = por %p139, %p140
    %p142 = scmp.ne.s32.totalorder %s131, %s134
    %p143 = scmp.eq.s32.totalorder %s16, 1
    %p144 = por %p142, %p143
    %p145 = scmp.ne.s32.totalorder %s134, %s135
    %p146 = scmp.eq.s32.totalorder %s16, 0
    %p147 = por %p145, %p146
    %p148 = scmp.ne.s32.totalorder %s134, %s135
    %p149 = scmp.eq.s32.totalorder %s17, 1
    %p150 = por %p148, %p149
    %p152 = scmp.ne.s32.totalorder %s135, %s151
    %p153 = scmp.eq.s32.totalorder %s17, 0
    %p154 = por %p152, %p153
    %p155 = scmp.le.s32.totalorder 1, %s11
    %p156 = scmp.lt.s32.totalorder %s11, 3
    %p157 = pnand %p155, %p156
    %p158 = pneg %p157
    // Predicated region
    $region9: #{semantic_segmentor_forward.1} parent=5 // pred_check
      _
    $region10: #{semantic_segmentor_forward.1} parent=5 // pred_check_branch
      %160 = sbr.rel (%p157) target = $region12
    $region11: #{semantic_segmentor_forward.1} parent=5 // pred_region
      %s161 = ssub.s32 %s11, 1
      // Predicated region
      $region13: #{semantic_segmentor_forward.1} parent=11 // pred_check
        %p162 = pneg %p58
      $region14: #{semantic_segmentor_forward.1} parent=11 // pred_check_branch
        %164 = sbr.rel (%p162) target = $region16
      $region15: #{semantic_segmentor_forward.1} parent=11 // pred_region
        _
      $region16: #{semantic_segmentor_forward.1} parent=11 // pred_fallthru
        _
      // Predicated region
      $region17: #{semantic_segmentor_forward.1} parent=11 // pred_check
        %p165 = pneg %p79
      $region18: #{semantic_segmentor_forward.1} parent=11 // pred_check_branch
        %167 = sbr.rel (%p165) target = $region20
      $region19: #{semantic_segmentor_forward.1} parent=11 // pred_region
        _
      $region20: #{semantic_segmentor_forward.1} parent=11 // pred_fallthru
        _
      // Predicated region
      $region21: #{semantic_segmentor_forward.1} parent=11 // pred_check
        %p168 = pneg %p100
      $region22: #{semantic_segmentor_forward.1} parent=11 // pred_check_branch
        %170 = sbr.rel (%p168) target = $region24
      $region23: #{semantic_segmentor_forward.1} parent=11 // pred_region
        _
      $region24: #{semantic_segmentor_forward.1} parent=11 // pred_fallthru
        _
      // Predicated region
      $region25: #{semantic_segmentor_forward.1} parent=11 // pred_check
        %p171 = pneg %p121
      $region26: #{semantic_segmentor_forward.1} parent=11 // pred_check_branch
        %173 = sbr.rel (%p171) target = $region28
      $region27: #{semantic_segmentor_forward.1} parent=11 // pred_region
        _
      $region28: #{semantic_segmentor_forward.1} parent=11 // pred_fallthru
        _
    $region12: #{semantic_segmentor_forward.1} parent=5 // pred_fallthru
      _
    %p174 = scmp.lt.s32.totalorder %s11, 2
    // Predicated region
    $region29: #{semantic_segmentor_forward.1} parent=5 // pred_check
      %p175 = pneg %p174
    $region30: #{semantic_segmentor_forward.1} parent=5 // pred_check_branch
      %177 = sbr.rel (%p175) target = $region32
    $region31: #{semantic_segmentor_forward.1} parent=5 // pred_region
      // Predicated region
      $region33: #{semantic_segmentor_forward.1} parent=31 // pred_check
        %p178 = pneg %p31
      $region34: #{semantic_segmentor_forward.1} parent=31 // pred_check_branch
        %180 = sbr.rel (%p178) target = $region36
      $region35: #{semantic_segmentor_forward.1} parent=31 // pred_region
        %p181 = scmp.lt.s32.totalorder %s11, 1
        %s182 = scalar_select %p181, %s11, 1
        %s183 = smul.addr %s182, 54
        %s184 = smul.addr %s183, 8
        %s185 = scalar_lea.vmem %s0, %s184
      $region36: #{semantic_segmentor_forward.1} parent=31 // pred_fallthru
        _
    $region32: #{semantic_segmentor_forward.1} parent=5 // pred_fallthru
      _
    %p186 = scmp.le.s32.totalorder 1, %s11
    %p187 = scmp.lt.s32.totalorder %s11, 3
    %p188 = pnand %p186, %p187
    %p189 = pneg %p188
    // Predicated region
    $region37: #{semantic_segmentor_forward.1} parent=5 // pred_check
      _
    $region38: #{semantic_segmentor_forward.1} parent=5 // pred_check_branch
      %191 = sbr.rel (%p188) target = $region40
    $region39: #{semantic_segmentor_forward.1} parent=5 // pred_region
      %s192 = ssub.s32 %s11, 1
      %p193 = scmp.lt.s32.totalorder %s16, 1
      %s194 = scalar_select %p193, %s16, 1
      %s195 = smul.addr %s194, 54
      %s196 = smul.addr %s195, 8
      %s197 = scalar_lea.vmem %s0, %s196
      %p198 = pneg %p37
      %p199 = pneg %p34
      %p200 = pneg %p58
      %p201 = pneg %p55
      %p202 = pneg %p79
      %p203 = pneg %p76
      %p204 = pneg %p100
      %p205 = pneg %p97
      %p206 = pneg %p121
      %p207 = pneg %p118
      %p208 = pneg %p147
      %p209 = pneg %p144
      %p210 = scmp.lt.s32.totalorder %s16, 1
      %s211 = scalar_select %p210, %s16, 1
      %s212 = smul.addr %s211, 2
      %s213 = smul.addr %s212, 8
      %s214 = scalar_lea.vmem %s5, %s213
      %p215 = scmp.lt.s32.totalorder %s16, 1
      %s216 = scalar_select %p215, %s16, 1
      %s217 = smul.addr %s216, 54
      %s218 = smul.addr %s217, 8
      %s219 = scalar_lea.vmem %s0, %s218
      %p220 = scmp.lt.s32.totalorder %s16, 1
      %s221 = scalar_select %p220, %s16, 1
      %s222 = smul.addr %s221, 2
      %s223 = smul.addr %s222, 8
      %s224 = scalar_lea.vmem %s5, %s223
      %v225 = vld [vmem:[%s219] sm:$0xff]
      %v226 = vld [vmem:[%s219 + $0x8] sm:$0xff]
      %v227 = vld [vmem:[%s219 + $0x10] sm:$0x3]
      %v228 = vld [vmem:[%s219 + $0x18] sm:$0xff]
      %v229 = vld [vmem:[%s219 + $0x20] sm:$0xff]
      %v230 = vld [vmem:[%s219 + $0x28] sm:$0x3]
      %v231 = vld [vmem:[%s219 + $0x30] sm:$0xff]
      %v232 = vld [vmem:[%s219 + $0x38] sm:$0xff]
      %v233 = vld [vmem:[%s219 + $0x40] sm:$0x3]
      %v234 = vld [vmem:[%s219 + $0x48] sm:$0xff]
      %v235 = vld [vmem:[%s219 + $0x50] sm:$0xff]
      %v236 = vld [vmem:[%s219 + $0x58] sm:$0x3]
      %v237 = vld [vmem:[%s219 + $0x60] sm:$0xff]
      %v238 = vld [vmem:[%s219 + $0x68] sm:$0xff]
      %v239 = vld [vmem:[%s219 + $0x70] sm:$0x3]
      %v240 = vld [vmem:[%s219 + $0x78] sm:$0xff]
      %v241 = vld [vmem:[%s219 + $0x80] sm:$0xff]
      %v242 = vld [vmem:[%s219 + $0x88] sm:$0x3]
      %v243 = vld [vmem:[%s219 + $0x90] sm:$0xff]
      %v244 = vld [vmem:[%s219 + $0x98] sm:$0xff]
      %v245 = vld [vmem:[%s219 + $0xa0] sm:$0x3]
      %v246 = vld [vmem:[%s219 + $0xa8] sm:$0xff]
      %v247 = vld [vmem:[%s219 + $0xb0] sm:$0xff]
      %v248 = vld [vmem:[%s219 + $0xb8] sm:$0x3]
      %v249 = vld [vmem:[%s219 + $0xc0] sm:$0xff]
      %v250 = vld [vmem:[%s219 + $0xc8] sm:$0xff]
      %v251 = vld [vmem:[%s219 + $0xd0] sm:$0x3]
      %v252 = vld [vmem:[%s219 + $0xd8] sm:$0xff]
      %v253 = vld [vmem:[%s219 + $0xe0] sm:$0xff]
      %v254 = vld [vmem:[%s219 + $0xe8] sm:$0x3]
      %v255 = vld [vmem:[%s219 + $0xf0] sm:$0xff]
      %v256 = vld [vmem:[%s219 + $0xf8] sm:$0xff]
      %v257 = vld [vmem:[%s219 + $0x100] sm:$0x3]
      %v258 = vld [vmem:[%s219 + $0x108] sm:$0xff]
      %v259 = vld [vmem:[%s219 + $0x110] sm:$0xff]
      %v260 = vld [vmem:[%s219 + $0x118] sm:$0x3]
      %v261 = vld [vmem:[%s219 + $0x120] sm:$0xff]
      %v262 = vld [vmem:[%s219 + $0x128] sm:$0xff]
      %v263 = vld [vmem:[%s219 + $0x130] sm:$0x3]
      %v264 = vld [vmem:[%s219 + $0x138] sm:$0xff]
      %v265 = vld [vmem:[%s219 + $0x140] sm:$0xff]
      %v266 = vld [vmem:[%s219 + $0x148] sm:$0x3]
      %v267 = vld [vmem:[%s219 + $0x150] sm:$0xff]
      %v268 = vld [vmem:[%s219 + $0x158] sm:$0xff]
      %v269 = vld [vmem:[%s219 + $0x160] sm:$0x3]
      %v270 = vld [vmem:[%s219 + $0x168] sm:$0xff]
      %v271 = vld [vmem:[%s219 + $0x170] sm:$0xff]
      %v272 = vld [vmem:[%s219 + $0x178] sm:$0x3]
      %v273 = vld [vmem:[%s219 + $0x180] sm:$0xff]
      %v274 = vld [vmem:[%s219 + $0x188] sm:$0xff]
      %v275 = vld [vmem:[%s219 + $0x190] sm:$0x3]
      %v276 = vld [vmem:[%s219 + $0x198] sm:$0xff]
      %v277 = vld [vmem:[%s219 + $0x1a0] sm:$0xff]
      %v278 = vld [vmem:[%s219 + $0x1a8] sm:$0x3]
      %vm327 = vcmask 1046528
      %v328 = vrot.slane %v225, 1
      %v329 = vrot.slane %v226, 1
      %v330 = vsel %vm327, %v328, %v329
      %v331 = vrot.slane %v227, 1
      %v332 = vsel %vm327, %v329, %v331
      %v333 = vrot.slane %v228, 1
      %v334 = vrot.slane %v229, 1
      %v335 = vsel %vm327, %v333, %v334
      %v336 = vrot.slane %v230, 1
      %v337 = vsel %vm327, %v334, %v336
      %v338 = vrot.slane %v231, 1
      %v339 = vrot.slane %v232, 1
      %v340 = vsel %vm327, %v338, %v339
      %v341 = vrot.slane %v233, 1
      %v342 = vsel %vm327, %v339, %v341
      %v343 = vrot.slane %v234, 1
      %v344 = vrot.slane %v235, 1
      %v345 = vsel %vm327, %v343, %v344
      %v346 = vrot.slane %v236, 1
      %v347 = vsel %vm327, %v344, %v346
      %v348 = vrot.slane %v237, 1
      %v349 = vrot.slane %v238, 1
      %v350 = vsel %vm327, %v348, %v349
      %v351 = vrot.slane %v239, 1
      %v352 = vsel %vm327, %v349, %v351
      %v353 = vrot.slane %v240, 1
      %v354 = vrot.slane %v241, 1
      %v355 = vsel %vm327, %v353, %v354
      %v356 = vrot.slane %v242, 1
      %v357 = vsel %vm327, %v354, %v356
      %v358 = vrot.slane %v243, 1
      %v359 = vrot.slane %v244, 1
      %v360 = vsel %vm327, %v358, %v359
      %v361 = vrot.slane %v245, 1
      %v362 = vsel %vm327, %v359, %v361
      %v363 = vrot.slane %v246, 1
      %v364 = vrot.slane %v247, 1
      %v365 = vsel %vm327, %v363, %v364
      %v366 = vrot.slane %v248, 1
      %v367 = vsel %vm327, %v364, %v366
      %v368 = vrot.slane %v249, 1
      %v369 = vrot.slane %v250, 1
      %v370 = vsel %vm327, %v368, %v369
      %v371 = vrot.slane %v251, 1
      %v372 = vsel %vm327, %v369, %v371
      %v373 = vrot.slane %v252, 1
      %v374 = vrot.slane %v253, 1
      %v375 = vsel %vm327, %v373, %v374
      %v376 = vrot.slane %v254, 1
      %v377 = vsel %vm327, %v374, %v376
      %v378 = vrot.slane %v255, 1
      %v379 = vrot.slane %v256, 1
      %v380 = vsel %vm327, %v378, %v379
      %v381 = vrot.slane %v257, 1
      %v382 = vsel %vm327, %v379, %v381
      %v383 = vrot.slane %v258, 1
      %v384 = vrot.slane %v259, 1
      %v385 = vsel %vm327, %v383, %v384
      %v386 = vrot.slane %v260, 1
      %v387 = vsel %vm327, %v384, %v386
      %v388 = vrot.slane %v261, 1
      %v389 = vrot.slane %v262, 1
      %v390 = vsel %vm327, %v388, %v389
      %v391 = vrot.slane %v263, 1
      %v392 = vsel %vm327, %v389, %v391
      %v393 = vrot.slane %v264, 1
      %v394 = vrot.slane %v265, 1
      %v395 = vsel %vm327, %v393, %v394
      %v396 = vrot.slane %v266, 1
      %v397 = vsel %vm327, %v394, %v396
      %v398 = vrot.slane %v267, 1
      %v399 = vrot.slane %v268, 1
      %v400 = vsel %vm327, %v398, %v399
      %v401 = vrot.slane %v269, 1
      %v402 = vsel %vm327, %v399, %v401
      %v403 = vrot.slane %v270, 1
      %v404 = vrot.slane %v271, 1
      %v405 = vsel %vm327, %v403, %v404
      %v406 = vrot.slane %v272, 1
      %v407 = vsel %vm327, %v404, %v406
      %408 = vrot.lane.b32.xlu0 %v330, 6
      %v409 = vpop.permute.xlu0 %408
      %410 = vrot.lane.b32.xlu0 %v332, 6
      %v411 = vpop.permute.xlu0 %410
      %412 = vrot.lane.b32.xlu0 %v335, 6
      %v413 = vpop.permute.xlu0 %412
      %414 = vrot.lane.b32.xlu0 %v337, 6
      %v415 = vpop.permute.xlu0 %414
      %416 = vrot.lane.b32.xlu0 %v340, 6
      %v417 = vpop.permute.xlu0 %416
      %418 = vrot.lane.b32.xlu0 %v342, 6
      %v419 = vpop.permute.xlu0 %418
      %420 = vrot.lane.b32.xlu0 %v345, 6
      %v421 = vpop.permute.xlu0 %420
      %422 = vrot.lane.b32.xlu0 %v347, 6
      %v423 = vpop.permute.xlu0 %422
      %424 = vrot.lane.b32.xlu0 %v350, 6
      %v425 = vpop.permute.xlu0 %424
      %426 = vrot.lane.b32.xlu0 %v352, 6
      %v427 = vpop.permute.xlu0 %426
      %428 = vrot.lane.b32.xlu0 %v355, 6
      %v429 = vpop.permute.xlu0 %428
      %430 = vrot.lane.b32.xlu0 %v357, 6
      %v431 = vpop.permute.xlu0 %430
      %432 = vrot.lane.b32.xlu0 %v360, 6
      %v433 = vpop.permute.xlu0 %432
      %434 = vrot.lane.b32.xlu0 %v362, 6
      %v435 = vpop.permute.xlu0 %434
      %436 = vrot.lane.b32.xlu0 %v365, 6
      %v437 = vpop.permute.xlu0 %436
      %438 = vrot.lane.b32.xlu0 %v367, 6
      %v439 = vpop.permute.xlu0 %438
      %440 = vrot.lane.b32.xlu0 %v370, 6
      %v441 = vpop.permute.xlu0 %440
      %442 = vrot.lane.b32.xlu0 %v372, 6
      %v443 = vpop.permute.xlu0 %442
      %444 = vrot.lane.b32.xlu0 %v375, 6
      %v445 = vpop.permute.xlu0 %444
      %446 = vrot.lane.b32.xlu0 %v377, 6
      %v447 = vpop.permute.xlu0 %446
      %448 = vrot.lane.b32.xlu0 %v380, 6
      %v449 = vpop.permute.xlu0 %448
      %450 = vrot.lane.b32.xlu0 %v382, 6
      %v451 = vpop.permute.xlu0 %450
      %452 = vrot.lane.b32.xlu0 %v385, 6
      %v453 = vpop.permute.xlu0 %452
      %454 = vrot.lane.b32.xlu0 %v387, 6
      %v455 = vpop.permute.xlu0 %454
      %456 = vrot.lane.b32.xlu0 %v390, 6
      %v457 = vpop.permute.xlu0 %456
      %458 = vrot.lane.b32.xlu0 %v392, 6
      %v459 = vpop.permute.xlu0 %458
      %460 = vrot.lane.b32.xlu0 %v395, 6
      %v461 = vpop.permute.xlu0 %460
      %462 = vrot.lane.b32.xlu0 %v397, 6
      %v463 = vpop.permute.xlu0 %462
      %464 = vrot.lane.b32.xlu0 %v400, 6
      %v465 = vpop.permute.xlu0 %464
      %466 = vrot.lane.b32.xlu0 %v402, 6
      %v467 = vpop.permute.xlu0 %466
      %468 = vrot.lane.b32.xlu0 %v405, 6
      %v469 = vpop.permute.xlu0 %468
      %470 = vrot.lane.b32.xlu0 %v407, 6
      %v471 = vpop.permute.xlu0 %470
      %vm504 = vcmask 1045504
      %v505 = vrot.slane %v225, 2
      %v506 = vrot.slane %v226, 2
      %v507 = vsel %vm504, %v505, %v506
      %v508 = vrot.slane %v227, 2
      %v509 = vsel %vm504, %v506, %v508
      %v510 = vrot.slane %v228, 2
      %v511 = vrot.slane %v229, 2
      %v512 = vsel %vm504, %v510, %v511
      %v513 = vrot.slane %v230, 2
      %v514 = vsel %vm504, %v511, %v513
      %v515 = vrot.slane %v231, 2
      %v516 = vrot.slane %v232, 2
      %v517 = vsel %vm504, %v515, %v516
      %v518 = vrot.slane %v233, 2
      %v519 = vsel %vm504, %v516, %v518
      %v520 = vrot.slane %v234, 2
      %v521 = vrot.slane %v235, 2
      %v522 = vsel %vm504, %v520, %v521
      %v523 = vrot.slane %v236, 2
      %v524 = vsel %vm504, %v521, %v523
      %v525 = vrot.slane %v237, 2
      %v526 = vrot.slane %v238, 2
      %v527 = vsel %vm504, %v525, %v526
      %v528 = vrot.slane %v239, 2
      %v529 = vsel %vm504, %v526, %v528
      %v530 = vrot.slane %v240, 2
      %v531 = vrot.slane %v241, 2
      %v532 = vsel %vm504, %v530, %v531
      %v533 = vrot.slane %v242, 2
      %v534 = vsel %vm504, %v531, %v533
      %v535 = vrot.slane %v243, 2
      %v536 = vrot.slane %v244, 2
      %v537 = vsel %vm504, %v535, %v536
      %v538 = vrot.slane %v245, 2
      %v539 = vsel %vm504, %v536, %v538
      %v540 = vrot.slane %v246, 2
      %v541 = vrot.slane %v247, 2
      %v542 = vsel %vm504, %v540, %v541
      %v543 = vrot.slane %v248, 2
      %v544 = vsel %vm504, %v541, %v543
      %v545 = vrot.slane %v249, 2
      %v546 = vrot.slane %v250, 2
      %v547 = vsel %vm504, %v545, %v546
      %v548 = vrot.slane %v251, 2
      %v549 = vsel %vm504, %v546, %v548
      %v550 = vrot.slane %v252, 2
      %v551 = vrot.slane %v253, 2
      %v552 = vsel %vm504, %v550, %v551
      %v553 = vrot.slane %v254, 2
      %v554 = vsel %vm504, %v551, %v553
      %v555 = vrot.slane %v255, 2
      %v556 = vrot.slane %v256, 2
      %v557 = vsel %vm504, %v555, %v556
      %v558 = vrot.slane %v257, 2
      %v559 = vsel %vm504, %v556, %v558
      %v560 = vrot.slane %v258, 2
      %v561 = vrot.slane %v259, 2
      %v562 = vsel %vm504, %v560, %v561
      %v563 = vrot.slane %v260, 2
      %v564 = vsel %vm504, %v561, %v563
      %v565 = vrot.slane %v261, 2
      %v566 = vrot.slane %v262, 2
      %v567 = vsel %vm504, %v565, %v566
      %v568 = vrot.slane %v263, 2
      %v569 = vsel %vm504, %v566, %v568
      %v570 = vrot.slane %v264, 2
      %v571 = vrot.slane %v265, 2
      %v572 = vsel %vm504, %v570, %v571
      %v573 = vrot.slane %v266, 2
      %v574 = vsel %vm504, %v571, %v573
      %v575 = vrot.slane %v267, 2
      %v576 = vrot.slane %v268, 2
      %v577 = vsel %vm504, %v575, %v576
      %v578 = vrot.slane %v269, 2
      %v579 = vsel %vm504, %v576, %v578
      %v580 = vrot.slane %v270, 2
      %v581 = vrot.slane %v271, 2
      %v582 = vsel %vm504, %v580, %v581
      %v583 = vrot.slane %v272, 2
      %v584 = vsel %vm504, %v581, %v583
      %585 = vrot.lane.b32.xlu0 %v507, 12
      %v586 = vpop.permute.xlu0 %585
      %587 = vrot.lane.b32.xlu0 %v509, 12
      %v588 = vpop.permute.xlu0 %587
      %589 = vrot.lane.b32.xlu0 %v512, 12
      %v590 = vpop.permute.xlu0 %589
      %591 = vrot.lane.b32.xlu0 %v514, 12
      %v592 = vpop.permute.xlu0 %591
      %593 = vrot.lane.b32.xlu0 %v517, 12
      %v594 = vpop.permute.xlu0 %593
      %595 = vrot.lane.b32.xlu0 %v519, 12
      %v596 = vpop.permute.xlu0 %595
      %597 = vrot.lane.b32.xlu0 %v522, 12
      %v598 = vpop.permute.xlu0 %597
      %599 = vrot.lane.b32.xlu0 %v524, 12
      %v600 = vpop.permute.xlu0 %599
      %601 = vrot.lane.b32.xlu0 %v527, 12
      %v602 = vpop.permute.xlu0 %601
      %603 = vrot.lane.b32.xlu0 %v529, 12
      %v604 = vpop.permute.xlu0 %603
      %605 = vrot.lane.b32.xlu0 %v532, 12
      %v606 = vpop.permute.xlu0 %605
      %607 = vrot.lane.b32.xlu0 %v534, 12
      %v608 = vpop.permute.xlu0 %607
      %609 = vrot.lane.b32.xlu0 %v537, 12
      %v610 = vpop.permute.xlu0 %609
      %611 = vrot.lane.b32.xlu0 %v539, 12
      %v612 = vpop.permute.xlu0 %611
      %613 = vrot.lane.b32.xlu0 %v542, 12
      %v614 = vpop.permute.xlu0 %613
      %615 = vrot.lane.b32.xlu0 %v544, 12
      %v616 = vpop.permute.xlu0 %615
      %617 = vrot.lane.b32.xlu0 %v547, 12
      %v618 = vpop.permute.xlu0 %617
      %619 = vrot.lane.b32.xlu0 %v549, 12
      %v620 = vpop.permute.xlu0 %619
      %621 = vrot.lane.b32.xlu0 %v552, 12
      %v622 = vpop.permute.xlu0 %621
      %623 = vrot.lane.b32.xlu0 %v554, 12
      %v624 = vpop.permute.xlu0 %623
      %625 = vrot.lane.b32.xlu0 %v557, 12
      %v626 = vpop.permute.xlu0 %625
      %627 = vrot.lane.b32.xlu0 %v559, 12
      %v628 = vpop.permute.xlu0 %627
      %629 = vrot.lane.b32.xlu0 %v562, 12
      %v630 = vpop.permute.xlu0 %629
      %631 = vrot.lane.b32.xlu0 %v564, 12
      %v632 = vpop.permute.xlu0 %631
      %633 = vrot.lane.b32.xlu0 %v567, 12
      %v634 = vpop.permute.xlu0 %633
      %635 = vrot.lane.b32.xlu0 %v569, 12
      %v636 = vpop.permute.xlu0 %635
      %637 = vrot.lane.b32.xlu0 %v572, 12
      %v638 = vpop.permute.xlu0 %637
      %639 = vrot.lane.b32.xlu0 %v574, 12
      %v640 = vpop.permute.xlu0 %639
      %641 = vrot.lane.b32.xlu0 %v577, 12
      %v642 = vpop.permute.xlu0 %641
      %643 = vrot.lane.b32.xlu0 %v579, 12
      %v644 = vpop.permute.xlu0 %643
      %645 = vrot.lane.b32.xlu0 %v582, 12
      %v646 = vpop.permute.xlu0 %645
      %647 = vrot.lane.b32.xlu0 %v584, 12
      %v648 = vpop.permute.xlu0 %647
      %683 = vrot.lane.b32.xlu0 %v228, 18
      %v684 = vpop.permute.xlu0 %683
      %685 = vrot.lane.b32.xlu0 %v229, 18
      %v686 = vpop.permute.xlu0 %685
      %687 = vrot.lane.b32.xlu0 %v231, 18
      %v688 = vpop.permute.xlu0 %687
      %689 = vrot.lane.b32.xlu0 %v232, 18
      %v690 = vpop.permute.xlu0 %689
      %691 = vrot.lane.b32.xlu0 %v234, 18
      %v692 = vpop.permute.xlu0 %691
      %693 = vrot.lane.b32.xlu0 %v235, 18
      %v694 = vpop.permute.xlu0 %693
      %695 = vrot.lane.b32.xlu0 %v237, 18
      %v696 = vpop.permute.xlu0 %695
      %697 = vrot.lane.b32.xlu0 %v238, 18
      %v698 = vpop.permute.xlu0 %697
      %699 = vrot.lane.b32.xlu0 %v240, 18
      %v700 = vpop.permute.xlu0 %699
      %701 = vrot.lane.b32.xlu0 %v241, 18
      %v702 = vpop.permute.xlu0 %701
      %703 = vrot.lane.b32.xlu0 %v243, 18
      %v704 = vpop.permute.xlu0 %703
      %705 = vrot.lane.b32.xlu0 %v244, 18
      %v706 = vpop.permute.xlu0 %705
      %707 = vrot.lane.b32.xlu0 %v246, 18
      %v708 = vpop.permute.xlu0 %707
      %709 = vrot.lane.b32.xlu0 %v247, 18
      %v710 = vpop.permute.xlu0 %709
      %711 = vrot.lane.b32.xlu0 %v249, 18
      %v712 = vpop.permute.xlu0 %711
      %713 = vrot.lane.b32.xlu0 %v250, 18
      %v714 = vpop.permute.xlu0 %713
      %715 = vrot.lane.b32.xlu0 %v252, 18
      %v716 = vpop.permute.xlu0 %715
      %717 = vrot.lane.b32.xlu0 %v253, 18
      %v718 = vpop.permute.xlu0 %717
      %719 = vrot.lane.b32.xlu0 %v255, 18
      %v720 = vpop.permute.xlu0 %719
      %721 = vrot.lane.b32.xlu0 %v256, 18
      %v722 = vpop.permute.xlu0 %721
      %723 = vrot.lane.b32.xlu0 %v258, 18
      %v724 = vpop.permute.xlu0 %723
      %725 = vrot.lane.b32.xlu0 %v259, 18
      %v726 = vpop.permute.xlu0 %725
      %727 = vrot.lane.b32.xlu0 %v261, 18
      %v728 = vpop.permute.xlu0 %727
      %729 = vrot.lane.b32.xlu0 %v262, 18
      %v730 = vpop.permute.xlu0 %729
      %731 = vrot.lane.b32.xlu0 %v264, 18
      %v732 = vpop.permute.xlu0 %731
      %733 = vrot.lane.b32.xlu0 %v265, 18
      %v734 = vpop.permute.xlu0 %733
      %735 = vrot.lane.b32.xlu0 %v267, 18
      %v736 = vpop.permute.xlu0 %735
      %737 = vrot.lane.b32.xlu0 %v268, 18
      %v738 = vpop.permute.xlu0 %737
      %739 = vrot.lane.b32.xlu0 %v270, 18
      %v740 = vpop.permute.xlu0 %739
      %741 = vrot.lane.b32.xlu0 %v271, 18
      %v742 = vpop.permute.xlu0 %741
      %743 = vrot.lane.b32.xlu0 %v273, 18
      %v744 = vpop.permute.xlu0 %743
      %745 = vrot.lane.b32.xlu0 %v274, 18
      %v746 = vpop.permute.xlu0 %745
      %v780 = vrot.slane %v273, 1
      %v781 = vrot.slane %v274, 1
      %v782 = vsel %vm327, %v780, %v781
      %v783 = vrot.slane %v275, 1
      %v784 = vsel %vm327, %v781, %v783
      %785 = vrot.lane.b32.xlu0 %v335, 24
      %v786 = vpop.permute.xlu0 %785
      %787 = vrot.lane.b32.xlu0 %v337, 24
      %v788 = vpop.permute.xlu0 %787
      %789 = vrot.lane.b32.xlu0 %v340, 24
      %v790 = vpop.permute.xlu0 %789
      %791 = vrot.lane.b32.xlu0 %v342, 24
      %v792 = vpop.permute.xlu0 %791
      %793 = vrot.lane.b32.xlu0 %v345, 24
      %v794 = vpop.permute.xlu0 %793
      %795 = vrot.lane.b32.xlu0 %v347, 24
      %v796 = vpop.permute.xlu0 %795
      %797 = vrot.lane.b32.xlu0 %v350, 24
      %v798 = vpop.permute.xlu0 %797
      %799 = vrot.lane.b32.xlu0 %v352, 24
      %v800 = vpop.permute.xlu0 %799
      %801 = vrot.lane.b32.xlu0 %v355, 24
      %v802 = vpop.permute.xlu0 %801
      %803 = vrot.lane.b32.xlu0 %v357, 24
      %v804 = vpop.permute.xlu0 %803
      %805 = vrot.lane.b32.xlu0 %v360, 24
      %v806 = vpop.permute.xlu0 %805
      %807 = vrot.lane.b32.xlu0 %v362, 24
      %v808 = vpop.permute.xlu0 %807
      %809 = vrot.lane.b32.xlu0 %v365, 24
      %v810 = vpop.permute.xlu0 %809
      %811 = vrot.lane.b32.xlu0 %v367, 24
      %v812 = vpop.permute.xlu0 %811
      %813 = vrot.lane.b32.xlu0 %v370, 24
      %v814 = vpop.permute.xlu0 %813
      %815 = vrot.lane.b32.xlu0 %v372, 24
      %v816 = vpop.permute.xlu0 %815
      %817 = vrot.lane.b32.xlu0 %v375, 24
      %v818 = vpop.permute.xlu0 %817
      %819 = vrot.lane.b32.xlu0 %v377, 24
      %v820 = vpop.permute.xlu0 %819
      %821 = vrot.lane.b32.xlu0 %v380, 24
      %v822 = vpop.permute.xlu0 %821
      %823 = vrot.lane.b32.xlu0 %v382, 24
      %v824 = vpop.permute.xlu0 %823
      %825 = vrot.lane.b32.xlu0 %v385, 24
      %v826 = vpop.permute.xlu0 %825
      %827 = vrot.lane.b32.xlu0 %v387, 24
      %v828 = vpop.permute.xlu0 %827
      %829 = vrot.lane.b32.xlu0 %v390, 24
      %v830 = vpop.permute.xlu0 %829
      %831 = vrot.lane.b32.xlu0 %v392, 24
      %v832 = vpop.permute.xlu0 %831
      %833 = vrot.lane.b32.xlu0 %v395, 24
      %v834 = vpop.permute.xlu0 %833
      %835 = vrot.lane.b32.xlu0 %v397, 24
      %v836 = vpop.permute.xlu0 %835
      %837 = vrot.lane.b32.xlu0 %v400, 24
      %v838 = vpop.permute.xlu0 %837
      %839 = vrot.lane.b32.xlu0 %v402, 24
      %v840 = vpop.permute.xlu0 %839
      %841 = vrot.lane.b32.xlu0 %v405, 24
      %v842 = vpop.permute.xlu0 %841
      %843 = vrot.lane.b32.xlu0 %v407, 24
      %v844 = vpop.permute.xlu0 %843
      %845 = vrot.lane.b32.xlu0 %v782, 24
      %v846 = vpop.permute.xlu0 %845
      %847 = vrot.lane.b32.xlu0 %v784, 24
      %v848 = vpop.permute.xlu0 %847
      %v881 = vrot.slane %v273, 2
      %v882 = vrot.slane %v274, 2
      %v883 = vsel %vm504, %v881, %v882
      %v884 = vrot.slane %v275, 2
      %v885 = vsel %vm504, %v882, %v884
      %886 = vrot.lane.b32.xlu0 %v512, 30
      %v887 = vpop.permute.xlu0 %886
      %888 = vrot.lane.b32.xlu0 %v514, 30
      %v889 = vpop.permute.xlu0 %888
      %890 = vrot.lane.b32.xlu0 %v517, 30
      %v891 = vpop.permute.xlu0 %890
      %892 = vrot.lane.b32.xlu0 %v519, 30
      %v893 = vpop.permute.xlu0 %892
      %894 = vrot.lane.b32.xlu0 %v522, 30
      %v895 = vpop.permute.xlu0 %894
      %896 = vrot.lane.b32.xlu0 %v524, 30
      %v897 = vpop.permute.xlu0 %896
      %898 = vrot.lane.b32.xlu0 %v527, 30
      %v899 = vpop.permute.xlu0 %898
      %900 = vrot.lane.b32.xlu0 %v529, 30
      %v901 = vpop.permute.xlu0 %900
      %902 = vrot.lane.b32.xlu0 %v532, 30
      %v903 = vpop.permute.xlu0 %902
      %904 = vrot.lane.b32.xlu0 %v534, 30
      %v905 = vpop.permute.xlu0 %904
      %906 = vrot.lane.b32.xlu0 %v537, 30
      %v907 = vpop.permute.xlu0 %906
      %908 = vrot.lane.b32.xlu0 %v539, 30
      %v909 = vpop.permute.xlu0 %908
      %910 = vrot.lane.b32.xlu0 %v542, 30
      %v911 = vpop.permute.xlu0 %910
      %912 = vrot.lane.b32.xlu0 %v544, 30
      %v913 = vpop.permute.xlu0 %912
      %914 = vrot.lane.b32.xlu0 %v547, 30
      %v915 = vpop.permute.xlu0 %914
      %916 = vrot.lane.b32.xlu0 %v549, 30
      %v917 = vpop.permute.xlu0 %916
      %918 = vrot.lane.b32.xlu0 %v552, 30
      %v919 = vpop.permute.xlu0 %918
      %920 = vrot.lane.b32.xlu0 %v554, 30
      %v921 = vpop.permute.xlu0 %920
      %922 = vrot.lane.b32.xlu0 %v557, 30
      %v923 = vpop.permute.xlu0 %922
      %924 = vrot.lane.b32.xlu0 %v559, 30
      %v925 = vpop.permute.xlu0 %924
      %926 = vrot.lane.b32.xlu0 %v562, 30
      %v927 = vpop.permute.xlu0 %926
      %928 = vrot.lane.b32.xlu0 %v564, 30
      %v929 = vpop.permute.xlu0 %928
      %930 = vrot.lane.b32.xlu0 %v567, 30
      %v931 = vpop.permute.xlu0 %930
      %932 = vrot.lane.b32.xlu0 %v569, 30
      %v933 = vpop.permute.xlu0 %932
      %934 = vrot.lane.b32.xlu0 %v572, 30
      %v935 = vpop.permute.xlu0 %934
      %936 = vrot.lane.b32.xlu0 %v574, 30
      %v937 = vpop.permute.xlu0 %936
      %938 = vrot.lane.b32.xlu0 %v577, 30
      %v939 = vpop.permute.xlu0 %938
      %940 = vrot.lane.b32.xlu0 %v579, 30
      %v941 = vpop.permute.xlu0 %940
      %942 = vrot.lane.b32.xlu0 %v582, 30
      %v943 = vpop.permute.xlu0 %942
      %944 = vrot.lane.b32.xlu0 %v584, 30
      %v945 = vpop.permute.xlu0 %944
      %946 = vrot.lane.b32.xlu0 %v883, 30
      %v947 = vpop.permute.xlu0 %946
      %948 = vrot.lane.b32.xlu0 %v885, 30
      %v949 = vpop.permute.xlu0 %948
      %984 = vrot.lane.b32.xlu0 %v231, 36
      %v985 = vpop.permute.xlu0 %984
      %986 = vrot.lane.b32.xlu0 %v232, 36
      %v987 = vpop.permute.xlu0 %986
      %988 = vrot.lane.b32.xlu0 %v234, 36
      %v989 = vpop.permute.xlu0 %988
      %990 = vrot.lane.b32.xlu0 %v235, 36
      %v991 = vpop.permute.xlu0 %990
      %992 = vrot.lane.b32.xlu0 %v237, 36
      %v993 = vpop.permute.xlu0 %992
      %994 = vrot.lane.b32.xlu0 %v238, 36
      %v995 = vpop.permute.xlu0 %994
      %996 = vrot.lane.b32.xlu0 %v240, 36
      %v997 = vpop.permute.xlu0 %996
      %998 = vrot.lane.b32.xlu0 %v241, 36
      %v999 = vpop.permute.xlu0 %998
      %1000 = vrot.lane.b32.xlu0 %v243, 36
      %v1001 = vpop.permute.xlu0 %1000
      %1002 = vrot.lane.b32.xlu0 %v244, 36
      %v1003 = vpop.permute.xlu0 %1002
      %1004 = vrot.lane.b32.xlu0 %v246, 36
      %v1005 = vpop.permute.xlu0 %1004
      %1006 = vrot.lane.b32.xlu0 %v247, 36
      %v1007 = vpop.permute.xlu0 %1006
      %1008 = vrot.lane.b32.xlu0 %v249, 36
      %v1009 = vpop.permute.xlu0 %1008
      %1010 = vrot.lane.b32.xlu0 %v250, 36
      %v1011 = vpop.permute.xlu0 %1010
      %1012 = vrot.lane.b32.xlu0 %v252, 36
      %v1013 = vpop.permute.xlu0 %1012
      %1014 = vrot.lane.b32.xlu0 %v253, 36
      %v1015 = vpop.permute.xlu0 %1014
      %1016 = vrot.lane.b32.xlu0 %v255, 36
      %v1017 = vpop.permute.xlu0 %1016
      %1018 = vrot.lane.b32.xlu0 %v256, 36
      %v1019 = vpop.permute.xlu0 %1018
      %1020 = vrot.lane.b32.xlu0 %v258, 36
      %v1021 = vpop.permute.xlu0 %1020
      %1022 = vrot.lane.b32.xlu0 %v259, 36
      %v1023 = vpop.permute.xlu0 %1022
      %1024 = vrot.lane.b32.xlu0 %v261, 36
      %v1025 = vpop.permute.xlu0 %1024
      %1026 = vrot.lane.b32.xlu0 %v262, 36
      %v1027 = vpop.permute.xlu0 %1026
      %1028 = vrot.lane.b32.xlu0 %v264, 36
      %v1029 = vpop.permute.xlu0 %1028
      %1030 = vrot.lane.b32.xlu0 %v265, 36
      %v1031 = vpop.permute.xlu0 %1030
      %1032 = vrot.lane.b32.xlu0 %v267, 36
      %v1033 = vpop.permute.xlu0 %1032
      %1034 = vrot.lane.b32.xlu0 %v268, 36
      %v1035 = vpop.permute.xlu0 %1034
      %1036 = vrot.lane.b32.xlu0 %v270, 36
      %v1037 = vpop.permute.xlu0 %1036
      %1038 = vrot.lane.b32.xlu0 %v271, 36
      %v1039 = vpop.permute.xlu0 %1038
      %1040 = vrot.lane.b32.xlu0 %v273, 36
      %v1041 = vpop.permute.xlu0 %1040
      %1042 = vrot.lane.b32.xlu0 %v274, 36
      %v1043 = vpop.permute.xlu0 %1042
      %1044 = vrot.lane.b32.xlu0 %v276, 36
      %v1045 = vpop.permute.xlu0 %1044
      %1046 = vrot.lane.b32.xlu0 %v277, 36
      %v1047 = vpop.permute.xlu0 %1046
      %v1081 = vrot.slane %v276, 1
      %v1082 = vrot.slane %v277, 1
      %v1083 = vsel %vm327, %v1081, %v1082
      %v1084 = vrot.slane %v278, 1
      %v1085 = vsel %vm327, %v1082, %v1084
      %1086 = vrot.lane.b32.xlu0 %v340, 42
      %v1087 = vpop.permute.xlu0 %1086
      %1088 = vrot.lane.b32.xlu0 %v342, 42
      %v1089 = vpop.permute.xlu0 %1088
      %1090 = vrot.lane.b32.xlu0 %v345, 42
      %v1091 = vpop.permute.xlu0 %1090
      %1092 = vrot.lane.b32.xlu0 %v347, 42
      %v1093 = vpop.permute.xlu0 %1092
      %1094 = vrot.lane.b32.xlu0 %v350, 42
      %v1095 = vpop.permute.xlu0 %1094
      %1096 = vrot.lane.b32.xlu0 %v352, 42
      %v1097 = vpop.permute.xlu0 %1096
      %1098 = vrot.lane.b32.xlu0 %v355, 42
      %v1099 = vpop.permute.xlu0 %1098
      %1100 = vrot.lane.b32.xlu0 %v357, 42
      %v1101 = vpop.permute.xlu0 %1100
      %1102 = vrot.lane.b32.xlu0 %v360, 42
      %v1103 = vpop.permute.xlu0 %1102
      %1104 = vrot.lane.b32.xlu0 %v362, 42
      %v1105 = vpop.permute.xlu0 %1104
      %1106 = vrot.lane.b32.xlu0 %v365, 42
      %v1107 = vpop.permute.xlu0 %1106
      %1108 = vrot.lane.b32.xlu0 %v367, 42
      %v1109 = vpop.permute.xlu0 %1108
      %1110 = vrot.lane.b32.xlu0 %v370, 42
      %v1111 = vpop.permute.xlu0 %1110
      %1112 = vrot.lane.b32.xlu0 %v372, 42
      %v1113 = vpop.permute.xlu0 %1112
      %1114 = vrot.lane.b32.xlu0 %v375, 42
      %v1115 = vpop.permute.xlu0 %1114
      %1116 = vrot.lane.b32.xlu0 %v377, 42
      %v1117 = vpop.permute.xlu0 %1116
      %1118 = vrot.lane.b32.xlu0 %v380, 42
      %v1119 = vpop.permute.xlu0 %1118
      %1120 = vrot.lane.b32.xlu0 %v382, 42
      %v1121 = vpop.permute.xlu0 %1120
      %1122 = vrot.lane.b32.xlu0 %v385, 42
      %v1123 = vpop.permute.xlu0 %1122
      %1124 = vrot.lane.b32.xlu0 %v387, 42
      %v1125 = vpop.permute.xlu0 %1124
      %1126 = vrot.lane.b32.xlu0 %v390, 42
      %v1127 = vpop.permute.xlu0 %1126
      %1128 = vrot.lane.b32.xlu0 %v392, 42
      %v1129 = vpop.permute.xlu0 %1128
      %1130 = vrot.lane.b32.xlu0 %v395, 42
      %v1131 = vpop.permute.xlu0 %1130
      %1132 = vrot.lane.b32.xlu0 %v397, 42
      %v1133 = vpop.permute.xlu0 %1132
      %1134 = vrot.lane.b32.xlu0 %v400, 42
      %v1135 = vpop.permute.xlu0 %1134
      %1136 = vrot.lane.b32.xlu0 %v402, 42
      %v1137 = vpop.permute.xlu0 %1136
      %1138 = vrot.lane.b32.xlu0 %v405, 42
      %v1139 = vpop.permute.xlu0 %1138
      %1140 = vrot.lane.b32.xlu0 %v407, 42
      %v1141 = vpop.permute.xlu0 %1140
      %1142 = vrot.lane.b32.xlu0 %v782, 42
      %v1143 = vpop.permute.xlu0 %1142
      %1144 = vrot.lane.b32.xlu0 %v784, 42
      %v1145 = vpop.permute.xlu0 %1144
      %1146 = vrot.lane.b32.xlu0 %v1083, 42
      %v1147 = vpop.permute.xlu0 %1146
      %1148 = vrot.lane.b32.xlu0 %v1085, 42
      %v1149 = vpop.permute.xlu0 %1148
      %v1182 = vrot.slane %v276, 2
      %v1183 = vrot.slane %v277, 2
      %v1184 = vsel %vm504, %v1182, %v1183
      %v1185 = vrot.slane %v278, 2
      %v1186 = vsel %vm504, %v1183, %v1185
      %1187 = vrot.lane.b32.xlu0 %v517, 48
      %v1188 = vpop.permute.xlu0 %1187
      %1189 = vrot.lane.b32.xlu0 %v519, 48
      %v1190 = vpop.permute.xlu0 %1189
      %1191 = vrot.lane.b32.xlu0 %v522, 48
      %v1192 = vpop.permute.xlu0 %1191
      %1193 = vrot.lane.b32.xlu0 %v524, 48
      %v1194 = vpop.permute.xlu0 %1193
      %1195 = vrot.lane.b32.xlu0 %v527, 48
      %v1196 = vpop.permute.xlu0 %1195
      %1197 = vrot.lane.b32.xlu0 %v529, 48
      %v1198 = vpop.permute.xlu0 %1197
      %1199 = vrot.lane.b32.xlu0 %v532, 48
      %v1200 = vpop.permute.xlu0 %1199
      %1201 = vrot.lane.b32.xlu0 %v534, 48
      %v1202 = vpop.permute.xlu0 %1201
      %1203 = vrot.lane.b32.xlu0 %v537, 48
      %v1204 = vpop.permute.xlu0 %1203
      %1205 = vrot.lane.b32.xlu0 %v539, 48
      %v1206 = vpop.permute.xlu0 %1205
      %1207 = vrot.lane.b32.xlu0 %v542, 48
      %v1208 = vpop.permute.xlu0 %1207
      %1209 = vrot.lane.b32.xlu0 %v544, 48
      %v1210 = vpop.permute.xlu0 %1209
      %1211 = vrot.lane.b32.xlu0 %v547, 48
      %v1212 = vpop.permute.xlu0 %1211
      %1213 = vrot.lane.b32.xlu0 %v549, 48
      %v1214 = vpop.permute.xlu0 %1213
      %1215 = vrot.lane.b32.xlu0 %v552, 48
      %v1216 = vpop.permute.xlu0 %1215
      %1217 = vrot.lane.b32.xlu0 %v554, 48
      %v1218 = vpop.permute.xlu0 %1217
      %1219 = vrot.lane.b32.xlu0 %v557, 48
      %v1220 = vpop.permute.xlu0 %1219
      %1221 = vrot.lane.b32.xlu0 %v559, 48
      %v1222 = vpop.permute.xlu0 %1221
      %1223 = vrot.lane.b32.xlu0 %v562, 48
      %v1224 = vpop.permute.xlu0 %1223
      %1225 = vrot.lane.b32.xlu0 %v564, 48
      %v1226 = vpop.permute.xlu0 %1225
      %1227 = vrot.lane.b32.xlu0 %v567, 48
      %v1228 = vpop.permute.xlu0 %1227
      %1229 = vrot.lane.b32.xlu0 %v569, 48
      %v1230 = vpop.permute.xlu0 %1229
      %1231 = vrot.lane.b32.xlu0 %v572, 48
      %v1232 = vpop.permute.xlu0 %1231
      %1233 = vrot.lane.b32.xlu0 %v574, 48
      %v1234 = vpop.permute.xlu0 %1233
      %1235 = vrot.lane.b32.xlu0 %v577, 48
      %v1236 = vpop.permute.xlu0 %1235
      %1237 = vrot.lane.b32.xlu0 %v579, 48
      %v1238 = vpop.permute.xlu0 %1237
      %1239 = vrot.lane.b32.xlu0 %v582, 48
      %v1240 = vpop.permute.xlu0 %1239
      %1241 = vrot.lane.b32.xlu0 %v584, 48
      %v1242 = vpop.permute.xlu0 %1241
      %1243 = vrot.lane.b32.xlu0 %v883, 48
      %v1244 = vpop.permute.xlu0 %1243
      %1245 = vrot.lane.b32.xlu0 %v885, 48
      %v1246 = vpop.permute.xlu0 %1245
      %1247 = vrot.lane.b32.xlu0 %v1184, 48
      %v1248 = vpop.permute.xlu0 %1247
      %1249 = vrot.lane.b32.xlu0 %v1186, 48
      %v1250 = vpop.permute.xlu0 %1249
      %vm1283 = vcmask 48128
      %v1284 = vsel %vm1283, %v225, %v409
      %v1285 = vsel %vm1283, %v226, %v411
      %v1286 = vsel %vm1283, %v228, %v413
      %v1287 = vsel %vm1283, %v229, %v415
      %v1288 = vsel %vm1283, %v231, %v417
      %v1289 = vsel %vm1283, %v232, %v419
      %v1290 = vsel %vm1283, %v234, %v421
      %v1291 = vsel %vm1283, %v235, %v423
      %v1292 = vsel %vm1283, %v237, %v425
      %v1293 = vsel %vm1283, %v238, %v427
      %v1294 = vsel %vm1283, %v240, %v429
      %v1295 = vsel %vm1283, %v241, %v431
      %v1296 = vsel %vm1283, %v243, %v433
      %v1297 = vsel %vm1283, %v244, %v435
      %v1298 = vsel %vm1283, %v246, %v437
      %v1299 = vsel %vm1283, %v247, %v439
      %v1300 = vsel %vm1283, %v249, %v441
      %v1301 = vsel %vm1283, %v250, %v443
      %v1302 = vsel %vm1283, %v252, %v445
      %v1303 = vsel %vm1283, %v253, %v447
      %v1304 = vsel %vm1283, %v255, %v449
      %v1305 = vsel %vm1283, %v256, %v451
      %v1306 = vsel %vm1283, %v258, %v453
      %v1307 = vsel %vm1283, %v259, %v455
      %v1308 = vsel %vm1283, %v261, %v457
      %v1309 = vsel %vm1283, %v262, %v459
      %v1310 = vsel %vm1283, %v264, %v461
      %v1311 = vsel %vm1283, %v265, %v463
      %v1312 = vsel %vm1283, %v267, %v465
      %v1313 = vsel %vm1283, %v268, %v467
      %v1314 = vsel %vm1283, %v270, %v469
      %v1315 = vsel %vm1283, %v271, %v471
      %vm1316 = vcmask 97280
      %v1317 = vsel %vm1316, %v1284, %v586
      %v1318 = vsel %vm1316, %v1285, %v588
      %v1319 = vsel %vm1316, %v1286, %v590
      %v1320 = vsel %vm1316, %v1287, %v592
      %v1321 = vsel %vm1316, %v1288, %v594
      %v1322 = vsel %vm1316, %v1289, %v596
      %v1323 = vsel %vm1316, %v1290, %v598
      %v1324 = vsel %vm1316, %v1291, %v600
      %v1325 = vsel %vm1316, %v1292, %v602
      %v1326 = vsel %vm1316, %v1293, %v604
      %v1327 = vsel %vm1316, %v1294, %v606
      %v1328 = vsel %vm1316, %v1295, %v608
      %v1329 = vsel %vm1316, %v1296, %v610
      %v1330 = vsel %vm1316, %v1297, %v612
      %v1331 = vsel %vm1316, %v1298, %v614
      %v1332 = vsel %vm1316, %v1299, %v616
      %v1333 = vsel %vm1316, %v1300, %v618
      %v1334 = vsel %vm1316, %v1301, %v620
      %v1335 = vsel %vm1316, %v1302, %v622
      %v1336 = vsel %vm1316, %v1303, %v624
      %v1337 = vsel %vm1316, %v1304, %v626
      %v1338 = vsel %vm1316, %v1305, %v628
      %v1339 = vsel %vm1316, %v1306, %v630
      %v1340 = vsel %vm1316, %v1307, %v632
      %v1341 = vsel %vm1316, %v1308, %v634
      %v1342 = vsel %vm1316, %v1309, %v636
      %v1343 = vsel %vm1316, %v1310, %v638
      %v1344 = vsel %vm1316, %v1311, %v640
      %v1345 = vsel %vm1316, %v1312, %v642
      %v1346 = vsel %vm1316, %v1313, %v644
      %v1347 = vsel %vm1316, %v1314, %v646
      %v1348 = vsel %vm1316, %v1315, %v648
      %vm1349 = vcmask 146432
      %v1350 = vsel %vm1349, %v1317, %v684
      %v1351 = vsel %vm1349, %v1318, %v686
      %v1352 = vsel %vm1349, %v1319, %v688
      %v1353 = vsel %vm1349, %v1320, %v690
      %v1354 = vsel %vm1349, %v1321, %v692
      %v1355 = vsel %vm1349, %v1322, %v694
      %v1356 = vsel %vm1349, %v1323, %v696
      %v1357 = vsel %vm1349, %v1324, %v698
      %v1358 = vsel %vm1349, %v1325, %v700
      %v1359 = vsel %vm1349, %v1326, %v702
      %v1360 = vsel %vm1349, %v1327, %v704
      %v1361 = vsel %vm1349, %v1328, %v706
      %v1362 = vsel %vm1349, %v1329, %v708
      %v1363 = vsel %vm1349, %v1330, %v710
      %v1364 = vsel %vm1349, %v1331, %v712
      %v1365 = vsel %vm1349, %v1332, %v714
      %v1366 = vsel %vm1349, %v1333, %v716
      %v1367 = vsel %vm1349, %v1334, %v718
      %v1368 = vsel %vm1349, %v1335, %v720
      %v1369 = vsel %vm1349, %v1336, %v722
      %v1370 = vsel %vm1349, %v1337, %v724
      %v1371 = vsel %vm1349, %v1338, %v726
      %v1372 = vsel %vm1349, %v1339, %v728
      %v1373 = vsel %vm1349, %v1340, %v730
      %v1374 = vsel %vm1349, %v1341, %v732
      %v1375 = vsel %vm1349, %v1342, %v734
      %v1376 = vsel %vm1349, %v1343, %v736
      %v1377 = vsel %vm1349, %v1344, %v738
      %v1378 = vsel %vm1349, %v1345, %v740
      %v1379 = vsel %vm1349, %v1346, %v742
      %v1380 = vsel %vm1349, %v1347, %v744
      %v1381 = vsel %vm1349, %v1348, %v746
      %vm1382 = vcmask 195584
      %v1383 = vsel %vm1382, %v1350, %v786
      %v1384 = vsel %vm1382, %v1351, %v788
      %v1385 = vsel %vm1382, %v1352, %v790
      %v1386 = vsel %vm1382, %v1353, %v792
      %v1387 = vsel %vm1382, %v1354, %v794
      %v1388 = vsel %vm1382, %v1355, %v796
      %v1389 = vsel %vm1382, %v1356, %v798
      %v1390 = vsel %vm1382, %v1357, %v800
      %v1391 = vsel %vm1382, %v1358, %v802
      %v1392 = vsel %vm1382, %v1359, %v804
      %v1393 = vsel %vm1382, %v1360, %v806
      %v1394 = vsel %vm1382, %v1361, %v808
      %v1395 = vsel %vm1382, %v1362, %v810
      %v1396 = vsel %vm1382, %v1363, %v812
      %v1397 = vsel %vm1382, %v1364, %v814
      %v1398 = vsel %vm1382, %v1365, %v816
      %v1399 = vsel %vm1382, %v1366, %v818
      %v1400 = vsel %vm1382, %v1367, %v820
      %v1401 = vsel %vm1382, %v1368, %v822
      %v1402 = vsel %vm1382, %v1369, %v824
      %v1403 = vsel %vm1382, %v1370, %v826
      %v1404 = vsel %vm1382, %v1371, %v828
      %v1405 = vsel %vm1382, %v1372, %v830
      %v1406 = vsel %vm1382, %v1373, %v832
      %v1407 = vsel %vm1382, %v1374, %v834
      %v1408 = vsel %vm1382, %v1375, %v836
      %v1409 = vsel %vm1382, %v1376, %v838
      %v1410 = vsel %vm1382, %v1377, %v840
      %v1411 = vsel %vm1382, %v1378, %v842
      %v1412 = vsel %vm1382, %v1379, %v844
      %v1413 = vsel %vm1382, %v1380, %v846
      %v1414 = vsel %vm1382, %v1381, %v848
      %vm1415 = vcmask 244736
      %v1416 = vsel %vm1415, %v1383, %v887
      %v1417 = vsel %vm1415, %v1384, %v889
      %v1418 = vsel %vm1415, %v1385, %v891
      %v1419 = vsel %vm1415, %v1386, %v893
      %v1420 = vsel %vm1415, %v1387, %v895
      %v1421 = vsel %vm1415, %v1388, %v897
      %v1422 = vsel %vm1415, %v1389, %v899
      %v1423 = vsel %vm1415, %v1390, %v901
      %v1424 = vsel %vm1415, %v1391, %v903
      %v1425 = vsel %vm1415, %v1392, %v905
      %v1426 = vsel %vm1415, %v1393, %v907
      %v1427 = vsel %vm1415, %v1394, %v909
      %v1428 = vsel %vm1415, %v1395, %v911
      %v1429 = vsel %vm1415, %v1396, %v913
      %v1430 = vsel %vm1415, %v1397, %v915
      %v1431 = vsel %vm1415, %v1398, %v917
      %v1432 = vsel %vm1415, %v1399, %v919
      %v1433 = vsel %vm1415, %v1400, %v921
      %v1434 = vsel %vm1415, %v1401, %v923
      %v1435 = vsel %vm1415, %v1402, %v925
      %v1436 = vsel %vm1415, %v1403, %v927
      %v1437 = vsel %vm1415, %v1404, %v929
      %v1438 = vsel %vm1415, %v1405, %v931
      %v1439 = vsel %vm1415, %v1406, %v933
      %v1440 = vsel %vm1415, %v1407, %v935
      %v1441 = vsel %vm1415, %v1408, %v937
      %v1442 = vsel %vm1415, %v1409, %v939
      %v1443 = vsel %vm1415, %v1410, %v941
      %v1444 = vsel %vm1415, %v1411, %v943
      %v1445 = vsel %vm1415, %v1412, %v945
      %v1446 = vsel %vm1415, %v1413, %v947
      %v1447 = vsel %vm1415, %v1414, %v949
      %vm1448 = vcmask 293888
      %v1449 = vsel %vm1448, %v1416, %v985
      %v1450 = vsel %vm1448, %v1417, %v987
      %v1451 = vsel %vm1448, %v1418, %v989
      %v1452 = vsel %vm1448, %v1419, %v991
      %v1453 = vsel %vm1448, %v1420, %v993
      %v1454 = vsel %vm1448, %v1421, %v995
      %v1455 = vsel %vm1448, %v1422, %v997
      %v1456 = vsel %vm1448, %v1423, %v999
      %v1457 = vsel %vm1448, %v1424, %v1001
      %v1458 = vsel %vm1448, %v1425, %v1003
      %v1459 = vsel %vm1448, %v1426, %v1005
      %v1460 = vsel %vm1448, %v1427, %v1007
      %v1461 = vsel %vm1448, %v1428, %v1009
      %v1462 = vsel %vm1448, %v1429, %v1011
      %v1463 = vsel %vm1448, %v1430, %v1013
      %v1464 = vsel %vm1448, %v1431, %v1015
      %v1465 = vsel %vm1448, %v1432, %v1017
      %v1466 = vsel %vm1448, %v1433, %v1019
      %v1467 = vsel %vm1448, %v1434, %v1021
      %v1468 = vsel %vm1448, %v1435, %v1023
      %v1469 = vsel %vm1448, %v1436, %v1025
      %v1470 = vsel %vm1448, %v1437, %v1027
      %v1471 = vsel %vm1448, %v1438, %v1029
      %v1472 = vsel %vm1448, %v1439, %v1031
      %v1473 = vsel %vm1448, %v1440, %v1033
      %v1474 = vsel %vm1448, %v1441, %v1035
      %v1475 = vsel %vm1448, %v1442, %v1037
      %v1476 = vsel %vm1448, %v1443, %v1039
      %v1477 = vsel %vm1448, %v1444, %v1041
      %v1478 = vsel %vm1448, %v1445, %v1043
      %v1479 = vsel %vm1448, %v1446, %v1045
      %v1480 = vsel %vm1448, %v1447, %v1047
      %vm1481 = vcmask 343040
      %v1482 = vsel %vm1481, %v1449, %v1087
      %v1483 = vsel %vm1481, %v1450, %v1089
      %v1484 = vsel %vm1481, %v1451, %v1091
      %v1485 = vsel %vm1481, %v1452, %v1093
      %v1486 = vsel %vm1481, %v1453, %v1095
      %v1487 = vsel %vm1481, %v1454, %v1097
      %v1488 = vsel %vm1481, %v1455, %v1099
      %v1489 = vsel %vm1481, %v1456, %v1101
      %v1490 = vsel %vm1481, %v1457, %v1103
      %v1491 = vsel %vm1481, %v1458, %v1105
      %v1492 = vsel %vm1481, %v1459, %v1107
      %v1493 = vsel %vm1481, %v1460, %v1109
      %v1494 = vsel %vm1481, %v1461, %v1111
      %v1495 = vsel %vm1481, %v1462, %v1113
      %v1496 = vsel %vm1481, %v1463, %v1115
      %v1497 = vsel %vm1481, %v1464, %v1117
      %v1498 = vsel %vm1481, %v1465, %v1119
      %v1499 = vsel %vm1481, %v1466, %v1121
      %v1500 = vsel %vm1481, %v1467, %v1123
      %v1501 = vsel %vm1481, %v1468, %v1125
      %v1502 = vsel %vm1481, %v1469, %v1127
      %v1503 = vsel %vm1481, %v1470, %v1129
      %v1504 = vsel %vm1481, %v1471, %v1131
      %v1505 = vsel %vm1481, %v1472, %v1133
      %v1506 = vsel %vm1481, %v1473, %v1135
      %v1507 = vsel %vm1481, %v1474, %v1137
      %v1508 = vsel %vm1481, %v1475, %v1139
      %v1509 = vsel %vm1481, %v1476, %v1141
      %v1510 = vsel %vm1481, %v1477, %v1143
      %v1511 = vsel %vm1481, %v1478, %v1145
      %v1512 = vsel %vm1481, %v1479, %v1147
      %v1513 = vsel %vm1481, %v1480, %v1149
      %vm1514 = vcmask 392192
      %v1515 = vsel %vm1514, %v1482, %v1188
      %v1516 = vsel %vm1514, %v1483, %v1190
      %v1517 = vsel %vm1514, %v1484, %v1192
      %v1518 = vsel %vm1514, %v1485, %v1194
      %v1519 = vsel %vm1514, %v1486, %v1196
      %v1520 = vsel %vm1514, %v1487, %v1198
      %v1521 = vsel %vm1514, %v1488, %v1200
      %v1522 = vsel %vm1514, %v1489, %v1202
      %v1523 = vsel %vm1514, %v1490, %v1204
      %v1524 = vsel %vm1514, %v1491, %v1206
      %v1525 = vsel %vm1514, %v1492, %v1208
      %v1526 = vsel %vm1514, %v1493, %v1210
      %v1527 = vsel %vm1514, %v1494, %v1212
      %v1528 = vsel %vm1514, %v1495, %v1214
      %v1529 = vsel %vm1514, %v1496, %v1216
      %v1530 = vsel %vm1514, %v1497, %v1218
      %v1531 = vsel %vm1514, %v1498, %v1220
      %v1532 = vsel %vm1514, %v1499, %v1222
      %v1533 = vsel %vm1514, %v1500, %v1224
      %v1534 = vsel %vm1514, %v1501, %v1226
      %v1535 = vsel %vm1514, %v1502, %v1228
      %v1536 = vsel %vm1514, %v1503, %v1230
      %v1537 = vsel %vm1514, %v1504, %v1232
      %v1538 = vsel %vm1514, %v1505, %v1234
      %v1539 = vsel %vm1514, %v1506, %v1236
      %v1540 = vsel %vm1514, %v1507, %v1238
      %v1541 = vsel %vm1514, %v1508, %v1240
      %v1542 = vsel %vm1514, %v1509, %v1242
      %v1543 = vsel %vm1514, %v1510, %v1244
      %v1544 = vsel %vm1514, %v1511, %v1246
      %v1545 = vsel %vm1514, %v1512, %v1248
      %v1546 = vsel %vm1514, %v1513, %v1250
      %v1547 = vld [vmem:[%s1] sm:$0xff]
      %v1548 = vld [vmem:[%s1 + $0x8] sm:$0xff]
      %v1549 = vld [vmem:[%s2] sm:$0xff]
      %v1550 = vld [vmem:[%s2 + $0x8] sm:$0xff]
      %1552 = vset.pattern.permute.xlu0 0
      %1553 = vperm.xlu0 %1552, %v1549
      %v1554 = vpop.permute.xlu0 %1553
      %1557 = vset.pattern.permute.xlu0 0
      %1558 = vperm.xlu0 %1557, %v1550
      %v1559 = vpop.permute.xlu0 %1558
      %vm1561 = vcmask 441344
      %v1563 = vsel %vm1561, %v1547, 0
      %v1566 = vsel %vm1561, %v1548, 0
      %v1569 = vsel %vm1561, %v1515, 0
      %v1572 = vsel %vm1561, %v1516, 0
      %v1575 = vsel %vm1561, %v1517, 0
      %v1578 = vsel %vm1561, %v1518, 0
      %v1581 = vsel %vm1561, %v1519, 0
      %v1584 = vsel %vm1561, %v1520, 0
      %v1587 = vsel %vm1561, %v1521, 0
      %v1590 = vsel %vm1561, %v1522, 0
      %v1593 = vsel %vm1561, %v1523, 0
      %v1596 = vsel %vm1561, %v1524, 0
      %v1599 = vsel %vm1561, %v1525, 0
      %v1602 = vsel %vm1561, %v1526, 0
      %v1605 = vsel %vm1561, %v1527, 0
      %v1608 = vsel %vm1561, %v1528, 0
      %v1611 = vsel %vm1561, %v1529, 0
      %v1614 = vsel %vm1561, %v1530, 0
      %v1617 = vsel %vm1561, %v1531, 0
      %v1620 = vsel %vm1561, %v1532, 0
      %v1623 = vsel %vm1561, %v1533, 0
      %v1626 = vsel %vm1561, %v1534, 0
      %v1629 = vsel %vm1561, %v1535, 0
      %v1632 = vsel %vm1561, %v1536, 0
      %v1635 = vsel %vm1561, %v1537, 0
      %v1638 = vsel %vm1561, %v1538, 0
      %v1641 = vsel %vm1561, %v1539, 0
      %v1644 = vsel %vm1561, %v1540, 0
      %v1647 = vsel %vm1561, %v1541, 0
      %v1650 = vsel %vm1561, %v1542, 0
      %v1653 = vsel %vm1561, %v1543, 0
      %v1656 = vsel %vm1561, %v1544, 0
      %v1659 = vsel %vm1561, %v1545, 0
      %v1662 = vsel %vm1561, %v1546, 0
      %1664 = vmatpush.xpose.msra.mxu0 %v1614
      %1665 = vmatpush.xpose.msra.mxu0 %v1611
      %1666 = vmatpush.xpose.msra.mxu0 %v1608
      %1667 = vmatpush.xpose.msra.mxu0 %v1605
      %1668 = vmatpush.xpose.msra.mxu0 %v1602
      %1669 = vmatpush.xpose.msra.mxu0 %v1599
      %1670 = vmatpush.xpose.msra.mxu0 %v1596
      %1671 = vmatpush.xpose.msra.mxu0 %v1593
      %1672 = vmatpush.xpose.msra.mxu0 %v1590
      %1673 = vmatpush.xpose.msra.mxu0 %v1587
      %1674 = vmatpush.xpose.msra.mxu0 %v1584
      %1675 = vmatpush.xpose.msra.mxu0 %v1581
      %1676 = vmatpush.xpose.msra.mxu0 %v1578
      %1677 = vmatpush.xpose.msra.mxu0 %v1575
      %1678 = vmatpush.xpose.msra.mxu0 %v1572
      %1679 = vmatpush.xpose.msra.mxu0 %v1569
      %1680 = vmatmul.f32.gmra.mxu0 %v1563
      %v1681 = vpop.f32.mrf.mxu0
      %v1682 = vadd.f32 %v1554, %v1681
      %1683 = vmatmul.f32.gmra.mxu0 %v1566
      %v1684 = vpop.f32.mrf.mxu0
      %v1685 = vadd.f32 %v1559, %v1684
      %1686 = vdwg.mxu0
      %1687 = vmatpush.xpose.msra.mxu0 %v1662
      %1688 = vmatpush.xpose.msra.mxu0 %v1659
      %1689 = vmatpush.xpose.msra.mxu0 %v1656
      %1690 = vmatpush.xpose.msra.mxu0 %v1653
      %1691 = vmatpush.xpose.msra.mxu0 %v1650
      %1692 = vmatpush.xpose.msra.mxu0 %v1647
      %1693 = vmatpush.xpose.msra.mxu0 %v1644
      %1694 = vmatpush.xpose.msra.mxu0 %v1641
      %1695 = vmatpush.xpose.msra.mxu0 %v1638
      %1696 = vmatpush.xpose.msra.mxu0 %v1635
      %1697 = vmatpush.xpose.msra.mxu0 %v1632
      %1698 = vmatpush.xpose.msra.mxu0 %v1629
      %1699 = vmatpush.xpose.msra.mxu0 %v1626
      %1700 = vmatpush.xpose.msra.mxu0 %v1623
      %1701 = vmatpush.xpose.msra.mxu0 %v1620
      %1702 = vmatpush.xpose.msra.mxu0 %v1617
      %1703 = vmatmul.f32.gmra.mxu0 %v1563
      %v1704 = vpop.f32.mrf.mxu0
      %v1705 = vadd.f32 %v1554, %v1704
      %1706 = vmatmul.f32.gmra.mxu0 %v1566
      %v1707 = vpop.f32.mrf.mxu0
      %v1708 = vadd.f32 %v1559, %v1707
      %1709 = vdwg.mxu0
      %v1710 = vmax.f32 %v1682, 0.0
      %v1711 = vmax.f32 %v1705, 0.0
      %v1712 = vmax.f32 %v1685, 0.0
      %v1713 = vmax.f32 %v1708, 0.0
      %v1714 = vld [vmem:[%s3] sm:$0xff]
      %v1715 = vld [vmem:[%s4] sm:$0xff]
      %1717 = vset.pattern.permute.xlu0 0
      %1718 = vperm.xlu0 %1717, %v1715
      %v1719 = vpop.permute.xlu0 %1718
      %vm1721 = vcmask 130048
      %v1723 = vsel %vm1721, %v1714, 0
      %1725 = vmatpush.msra.mxu0 0.0
      %1726 = vmatpush.msra.mxu0 0.0
      %1727 = vmatpush.msra.mxu0 0.0
      %1728 = vmatpush.msra.mxu0 0.0
      %1729 = vmatpush.msra.mxu0 0.0
      %1730 = vmatpush.msra.mxu0 0.0
      %1731 = vmatpush.msra.mxu0 0.0
      %1732 = vmatpush.msra.mxu0 0.0
      %1733 = vmatpush.msra.mxu0 0.0
      %1734 = vmatpush.msra.mxu0 0.0
      %1735 = vmatpush.msra.mxu0 0.0
      %1736 = vmatpush.msra.mxu0 0.0
      %1737 = vmatpush.msra.mxu0 0.0
      %1738 = vmatpush.msra.mxu0 0.0
      %1739 = vmatpush.msra.mxu0 %v1712
      %1740 = vmatpush.msra.mxu0 %v1710
      %1741 = vmatmul.f32.gmra.mxu0 %v1723
      %v1742 = vpop.f32.mrf.mxu0
      %v1743 = vadd.f32 %v1719, %v1742
      %1744 = vdwg.mxu0
      %1745 = vmatpush.msra.mxu0 0.0
      %1746 = vmatpush.msra.mxu0 0.0
      %1747 = vmatpush.msra.mxu0 0.0
      %1748 = vmatpush.msra.mxu0 0.0
      %1749 = vmatpush.msra.mxu0 0.0
      %1750 = vmatpush.msra.mxu0 0.0
      %1751 = vmatpush.msra.mxu0 0.0
      %1752 = vmatpush.msra.mxu0 0.0
      %1753 = vmatpush.msra.mxu0 0.0
      %1754 = vmatpush.msra.mxu0 0.0
      %1755 = vmatpush.msra.mxu0 0.0
      %1756 = vmatpush.msra.mxu0 0.0
      %1757 = vmatpush.msra.mxu0 0.0
      %1758 = vmatpush.msra.mxu0 0.0
      %1759 = vmatpush.msra.mxu0 %v1713
      %1760 = vmatpush.msra.mxu0 %v1711
      %1761 = vmatmul.f32.gmra.mxu0 %v1723
      %v1762 = vpop.f32.mrf.mxu0
      %v1763 = vadd.f32 %v1719, %v1762
      %1764 = vdwg.mxu0
      %1765 = vst [vmem:[%s224] sm:$0xff] %v1743
      %1766 = vst [vmem:[%s224 + $0x8] sm:$0xff] %v1763
      %p1767 = scmp.lt.s32.totalorder %s16, 1
      %s1768 = scalar_select %p1767, %s16, 1
      %s1769 = smul.addr %s1768, 2
      %s1770 = smul.addr %s1769, 8
      %s1771 = scalar_lea.vmem %s5, %s1770
      // Predicated region
      $region41: #{semantic_segmentor_forward.1} parent=39 // pred_check
        %p1772 = pneg %p144
      $region42: #{semantic_segmentor_forward.1} parent=39 // pred_check_branch
        %1774 = sbr.rel (%p1772) target = $region44
      $region43: #{semantic_segmentor_forward.1} parent=39 // pred_region
        _
      $region44: #{semantic_segmentor_forward.1} parent=39 // pred_fallthru
        _
    $region40: #{semantic_segmentor_forward.1} parent=5 // pred_fallthru
      _
    %p1775 = scmp.le.s32.totalorder 2, %s11
    // Predicated region
    $region45: #{semantic_segmentor_forward.1} parent=5 // pred_check
      %p1776 = pneg %p1775
    $region46: #{semantic_segmentor_forward.1} parent=5 // pred_check_branch
      %1778 = sbr.rel (%p1776) target = $region48
    $region47: #{semantic_segmentor_forward.1} parent=5 // pred_region
      %s1779 = ssub.s32 %s11, 2
      // Predicated region
      $region49: #{semantic_segmentor_forward.1} parent=47 // pred_check
        %p1780 = pneg %p150
      $region50: #{semantic_segmentor_forward.1} parent=47 // pred_check_branch
        %1782 = sbr.rel (%p1780) target = $region52
      $region51: #{semantic_segmentor_forward.1} parent=47 // pred_region
        %p1783 = scmp.lt.s32.totalorder %s17, 1
        %s1784 = scalar_select %p1783, %s17, 1
        %s1785 = smul.addr %s1784, 2
        %s1786 = smul.addr %s1785, 8
        %s1787 = scalar_lea.vmem %s5, %s1786
      $region52: #{semantic_segmentor_forward.1} parent=47 // pred_fallthru
        _
    $region48: #{semantic_segmentor_forward.1} parent=5 // pred_fallthru
      _
  $region6: #{semantic_segmentor_forward.1} parent=0 // loop_footer
    %s15 = sadd.s32 1, %s11
  $region7: #{semantic_segmentor_forward.1} parent=0 // loop_footer_branch
    %10 = sbr.rel target = $region3
  $region8: #{semantic_segmentor_forward.1} parent=0 // loop_exit
    _

</llo_original>
